<compile_context>
chip_gen: v6e
topology: v6e:2x2x1
jax: 0.10.0
libtpu: 0.0.40
codegen_flags: <defaults>
</compile_context>

<pallas_src>
import jax
import jax.numpy as jnp
from jax.experimental import pallas as pl
from jax.experimental.pallas import tpu as pltpu

EPS = 1e-5
_VMEM_BUDGET = 8 * 1024 * 1024  # conservative: fits every generation's default


def _num_tensorcores():
    """Best-effort TensorCore count of the local device (1 if unknown)."""
    try:
        dev = jax.devices()[0]
        for attr in ("num_cores", "core_count"):
            v = getattr(dev, attr, None)
            if isinstance(v, int) and v > 0:
                return v
    except Exception:
        pass
    return 1


def _pick_c_tile(c, n, hw, dtype):
    """Largest channel tile whose double-buffered in+out footprint fits VMEM,
    preferring an even split across TensorCores when the device has >1."""
    itemsize = jnp.dtype(dtype).itemsize
    # double-buffered input tile + double-buffered output tile, per channel
    bytes_per_chan = 2 * 2 * itemsize * n * hw
    max_fit = max(1, _VMEM_BUDGET // bytes_per_chan)

    ncores = _num_tensorcores()
    if ncores > 1 and c % ncores == 0:
        t = c // ncores
        if t <= max_fit and (t % 8 == 0 or t == c):
            return t

    for t in range(c, 0, -1):
        if c % t:
            continue
        if t != c and t % 8:                 # keep sublane (8) alignment
            continue
        if t <= max_fit:
            return t
    return c  # fallback: single full-channel block


def _bn_kernel_2d(x_ref, g_ref, b_ref, o_ref):
    # x_ref/o_ref: (c_tile, HW)   g_ref/b_ref: (c_tile, 1)
    x = x_ref[...].astype(jnp.float32)
    mean = jnp.mean(x, axis=1, keepdims=True)            # (c_tile, 1)
    d = x - mean                                         # only used for var
    var = jnp.mean(d * d, axis=1, keepdims=True)         # biased variance
    inv = jax.lax.rsqrt(var + EPS)                       # (c_tile, 1)
    s = inv * g_ref[...]                                 # per-channel scale
    t = b_ref[...] - mean * s                            # per-channel shift
    o_ref[...] = (x * s + t).astype(o_ref.dtype)


def _bn_kernel_3d(x_ref, g_ref, b_ref, o_ref):
    # x_ref/o_ref: (N, c_tile, HW)   g_ref/b_ref: (1, c_tile, 1)
    x = x_ref[...].astype(jnp.float32)
    mean = jnp.mean(x, axis=(0, 2), keepdims=True)       # (1, c_tile, 1)
    d = x - mean
    var = jnp.mean(d * d, axis=(0, 2), keepdims=True)
    inv = jax.lax.rsqrt(var + EPS)
    s = inv * g_ref[...]
    t = b_ref[...] - mean * s
    o_ref[...] = (x * s + t).astype(o_ref.dtype)


def batchnorm2d(x_nchw, gamma, beta):
    """Training-mode BatchNorm2d forward. x_nchw: (N, C, H, W)."""
    n, c, h, w = x_nchw.shape
    hw = h * w
    c_tile = _pick_c_tile(c, n, hw, x_nchw.dtype)
    grid = (c // c_tile,)

    itemsize = jnp.dtype(x_nchw.dtype).itemsize
    cost = pl.CostEstimate(
        flops=5 * n * c * hw,
        transcendentals=c,
        bytes_accessed=2 * n * c * hw * itemsize + 2 * c * 4,
    )
    cparams = pltpu.CompilerParams(dimension_semantics=("parallel",))

    if n == 1:
        # Free reshape: squeeze the degenerate batch axis, kernel works in 2D.
        x2d = x_nchw.reshape(c, hw)
        g2d = gamma.reshape(c, 1).astype(jnp.float32)
        b2d = beta.reshape(c, 1).astype(jnp.float32)
        y2d = pl.pallas_call(
            _bn_kernel_2d,
            out_shape=jax.ShapeDtypeStruct((c, hw), x_nchw.dtype),
            grid_spec=pltpu.PrefetchScalarGridSpec(
                num_scalar_prefetch=0,
                grid=grid,
                in_specs=[
                    pl.BlockSpec((c_tile, hw), lambda i: (i, 0)),
                    pl.BlockSpec((c_tile, 1), lambda i: (i, 0)),
                    pl.BlockSpec((c_tile, 1), lambda i: (i, 0)),
                ],
                out_specs=pl.BlockSpec((c_tile, hw), lambda i: (i, 0)),
            ),
            compiler_params=cparams,
            cost_estimate=cost,
        )(x2d, g2d, b2d)
        return y2d.reshape(n, c, h, w)

    # General N>1 path: still no wrapper transpose, reduce over (batch, spatial).
    x3d = x_nchw.reshape(n, c, hw)
    g3d = gamma.reshape(1, c, 1).astype(jnp.float32)
    b3d = beta.reshape(1, c, 1).astype(jnp.float32)
    y3d = pl.pallas_call(
        _bn_kernel_3d,
        out_shape=jax.ShapeDtypeStruct((n, c, hw), x_nchw.dtype),
        grid_spec=pltpu.PrefetchScalarGridSpec(
            num_scalar_prefetch=0,
            grid=grid,
            in_specs=[
                pl.BlockSpec((n, c_tile, hw), lambda i: (0, i, 0)),
                pl.BlockSpec((1, c_tile, 1), lambda i: (0, i, 0)),
                pl.BlockSpec((1, c_tile, 1), lambda i: (0, i, 0)),
            ],
            out_specs=pl.BlockSpec((n, c_tile, hw), lambda i: (0, i, 0)),
        ),
        compiler_params=cparams,
        cost_estimate=cost,
    )(x3d, g3d, b3d)
    return y3d.reshape(n, c, h, w)


def _reference(x_nchw, gamma, beta):
    xf = x_nchw.astype(jnp.float32)
    mean = jnp.mean(xf, axis=(0, 2, 3), keepdims=True)
    var = jnp.mean((xf - mean) ** 2, axis=(0, 2, 3), keepdims=True)
    g = gamma.reshape(1, -1, 1, 1)
    b = beta.reshape(1, -1, 1, 1)
    return (xf - mean) * jax.lax.rsqrt(var + EPS) * g + b


if __name__ == "__main__":
    key = jax.random.PRNGKey(0)
    kx, kg, kb = jax.random.split(key, 3)

    # Shapes from the original module: BatchNorm2d(192) on (1, 192, 28, 28).
    N, C, H, W = 1, 192, 28, 28
    x = jax.random.normal(kx, (N, C, H, W), dtype=jnp.float32)
    gamma = 1.0 + 0.1 * jax.random.normal(kg, (C,), dtype=jnp.float32)
    beta = 0.1 * jax.random.normal(kb, (C,), dtype=jnp.float32)

    y = batchnorm2d(x, gamma, beta)
    jax.block_until_ready(y)

    y_ref = _reference(x, gamma, beta)
    assert y.shape == (N, C, H, W)
    assert jnp.allclose(y, y_ref, atol=1e-4, rtol=1e-4)

    print("KERNEL_OK")
</pallas_src>

<mosaic_0001>
module attributes {stable_mosaic.version = 11 : i64} {
  func.func @_bn_kernel_2d(%arg0: i32, %arg1: memref<192x784xf32, #tpu.memory_space<vmem>>, %arg2: memref<192x1xf32, #tpu.memory_space<vmem>>, %arg3: memref<192x1xf32, #tpu.memory_space<vmem>>, %arg4: memref<192x784xf32, #tpu.memory_space<vmem>>) attributes {dimension_semantics = [#tpu.dimension_semantics<parallel>], iteration_bounds = array<i64: 1>, scalar_prefetch = 0 : i64, scratch_operands = 0 : i64, tpu.core_type = #tpu.core_type<tc>, window_params = [{transform_indices = @transform_0, window_bounds = array<i64: 192, 784>}, {transform_indices = @transform_1, window_bounds = array<i64: 192, 1>}, {transform_indices = @transform_2, window_bounds = array<i64: 192, 1>}, {transform_indices = @transform_3, window_bounds = array<i64: 192, 784>}]} {
    %c0 = arith.constant 0 : index
    %c0_0 = arith.constant 0 : index
    %0 = vector.load %arg1[%c0, %c0_0] : memref<192x784xf32, #tpu.memory_space<vmem>>, vector<192x784xf32>
    %cst = arith.constant dense<0.000000e+00> : vector<192xf32>
    %1 = vector.multi_reduction <add>, %0, %cst [1] : vector<192x784xf32> to vector<192xf32>
    %2 = vector.shape_cast %1 : vector<192xf32> to vector<192x1xf32>
    %cst_1 = arith.constant 7.840000e+02 : f32
    %3 = vector.broadcast %cst_1 : f32 to vector<192x1xf32>
    %4 = arith.divf %2, %3 : vector<192x1xf32>
    %5 = vector.broadcast %4 : vector<192x1xf32> to vector<192x784xf32>
    %6 = arith.subf %0, %5 : vector<192x784xf32>
    %7 = arith.mulf %6, %6 : vector<192x784xf32>
    %cst_2 = arith.constant dense<0.000000e+00> : vector<192xf32>
    %8 = vector.multi_reduction <add>, %7, %cst_2 [1] : vector<192x784xf32> to vector<192xf32>
    %9 = vector.shape_cast %8 : vector<192xf32> to vector<192x1xf32>
    %cst_3 = arith.constant 7.840000e+02 : f32
    %10 = vector.broadcast %cst_3 : f32 to vector<192x1xf32>
    %11 = arith.divf %9, %10 : vector<192x1xf32>
    %cst_4 = arith.constant 9.99999974E-6 : f32
    %12 = vector.broadcast %cst_4 : f32 to vector<192x1xf32>
    %13 = arith.addf %11, %12 : vector<192x1xf32>
    %14 = math.rsqrt %13 : vector<192x1xf32>
    %c0_5 = arith.constant 0 : index
    %c0_6 = arith.constant 0 : index
    %15 = vector.load %arg2[%c0_5, %c0_6] : memref<192x1xf32, #tpu.memory_space<vmem>>, vector<192x1xf32>
    %16 = arith.mulf %14, %15 : vector<192x1xf32>
    %c0_7 = arith.constant 0 : index
    %c0_8 = arith.constant 0 : index
    %17 = vector.load %arg3[%c0_7, %c0_8] : memref<192x1xf32, #tpu.memory_space<vmem>>, vector<192x1xf32>
    %18 = arith.mulf %4, %16 : vector<192x1xf32>
    %19 = arith.subf %17, %18 : vector<192x1xf32>
    %20 = vector.broadcast %16 : vector<192x1xf32> to vector<192x784xf32>
    %21 = arith.mulf %0, %20 : vector<192x784xf32>
    %22 = vector.broadcast %19 : vector<192x1xf32> to vector<192x784xf32>
    %23 = arith.addf %21, %22 : vector<192x784xf32>
    %c0_9 = arith.constant 0 : index
    %c0_10 = arith.constant 0 : index
    %24 = vector.load %arg4[%c0_9, %c0_10] : memref<192x784xf32, #tpu.memory_space<vmem>>, vector<192x784xf32>
    tpu.vector_store %arg4[%c0_9, %c0_10], %23 {strides = array<i32>} : memref<192x784xf32, #tpu.memory_space<vmem>>, vector<192x784xf32>,
    return
  }
  func.func @transform_0(%arg0: i32) -> (i32, i32) {
    %c0_i32 = arith.constant 0 : i32
    %c0_i32_0 = arith.constant 0 : i32
    return %arg0, %c0_i32 : i32, i32
  }
  func.func @transform_1(%arg0: i32) -> (i32, i32) {
    %c0_i32 = arith.constant 0 : i32
    %c0_i32_0 = arith.constant 0 : i32
    return %arg0, %c0_i32 : i32, i32
  }
  func.func @transform_2(%arg0: i32) -> (i32, i32) {
    %c0_i32 = arith.constant 0 : i32
    %c0_i32_0 = arith.constant 0 : i32
    return %arg0, %c0_i32 : i32, i32
  }
  func.func @transform_3(%arg0: i32) -> (i32, i32) {
    %c0_i32 = arith.constant 0 : i32
    %c0_i32_0 = arith.constant 0 : i32
    return %arg0, %c0_i32 : i32, i32
  }
}

</mosaic_0001>

<llo_original>
// kernel: tpu_custom_call.1
$region0: #{tpu_custom_call.1}
  #allocation0 [shape = 'u32[]', space=smem, size = 0x4, offset = 0x4, fixed_abs, tag = 'smem constant byte address 0x4 - core index']
  #allocation1 [shape = 'u32[144,128]{1,0:T(1,128)}', space=vmem, size = 0x12000, scoped, tag = 'internal scratch']
  %s0 = inlined_call_operand.hbm [shape: f32[192,784], index: 0, kind: input, shape index: {}]
  %s1 = inlined_call_operand.vmem [shape: f32[192,1], index: 1, kind: input, shape index: {}]
  %s2 = inlined_call_operand.vmem [shape: f32[192,1], index: 2, kind: input, shape index: {}]
  %s3 = inlined_call_operand.hbm [shape: f32[192,784], index: 3, kind: output, shape index: {}]
  %s4 = sld [smem:[#allocation0]]
  $region26: #{tpu_custom_call.1} parent=0
    _
  %s6 = ssub.s32 1, %s4
  %s7 = scalar_select 0, %s6, %s4
  $region1: #{tpu_custom_call.1} parent=0
    #allocation2 [shape = 'u8[688128]{0}', space=vmem, size = 0xa8000, scoped, tag = 'input window, operand 0, single buffered']
    #allocation3 [shape = 's32[1]{0}', space=sflag, size = 0x4, scoped, tag = 'scoped memory for tpu_custom_call.1']
    #allocation4 [shape = 's32[1]{0}', space=sflag, size = 0x4, scoped, tag = 'scoped memory for tpu_custom_call.1']
    #allocation5 [shape = 'u8[688128]{0}', space=vmem, size = 0xa8000, scoped, tag = 'output window, operand 0, single buffered']
    %8 = vsyncpa [#allocation3], 0
    %9 = vsyncpa [#allocation4], 0
    // Predicated region
    $region2: #{tpu_custom_call.1} parent=1 // pred_check
      _
    $region3: #{tpu_custom_call.1} parent=1 // pred_check_branch
      %11 = sbr.rel (0) target = $region5
    $region4: #{tpu_custom_call.1} parent=1 // pred_region
      %s13 = ssub.s32 21504, 21504
      %14 = vsyncadd [#allocation3], %s13
      %s15 = sshll.u32 [#allocation2], 4
      %s16 = int_to_ptr.vmem [resolvable:$true] %s15
      %21 = dma.hbm_to_vmem [thread:$0]  %s0, 21504, %s16, [#allocation3], 896, 896, 56
    $region5: #{tpu_custom_call.1} parent=1 // pred_fallthru
      _
    // Predicated region
    $region6: #{tpu_custom_call.1} parent=1 // pred_check
      _
    $region7: #{tpu_custom_call.1} parent=1 // pred_check_branch
      %23 = sbr.rel (0) target = $region9
    $region8: #{tpu_custom_call.1} parent=1 // pred_region
      _
    $region9: #{tpu_custom_call.1} parent=1 // pred_fallthru
      _
    // Predicated region
    $region10: #{tpu_custom_call.1} parent=1 // pred_check
      _
    $region11: #{tpu_custom_call.1} parent=1 // pred_check_branch
      %25 = sbr.rel (0) target = $region13
    $region12: #{tpu_custom_call.1} parent=1 // pred_region
      _
    $region13: #{tpu_custom_call.1} parent=1 // pred_fallthru
      _
    // Predicated region
    $region14: #{tpu_custom_call.1} parent=1 // pred_check
      _
    $region15: #{tpu_custom_call.1} parent=1 // pred_check_branch
      %27 = sbr.rel (0) target = $region17
    $region16: #{tpu_custom_call.1} parent=1 // pred_region
      %28 = dma.done [#allocation3], 21504
    $region17: #{tpu_custom_call.1} parent=1 // pred_fallthru
      _
    %v29 = vld [vmem:[#allocation2] sm:$0xff]
    %v30 = vld [vmem:[#allocation2 + $0x8] sm:$0xff]
    %v31 = vld [vmem:[#allocation2 + $0x10] sm:$0xff]
    %v32 = vld [vmem:[#allocation2 + $0x18] sm:$0xff]
    %v33 = vld [vmem:[#allocation2 + $0x20] sm:$0xff]
    %v34 = vld [vmem:[#allocation2 + $0x28] sm:$0xff]
    %v35 = vld [vmem:[#allocation2 + $0x30] sm:$0xff]
    %v36 = vld [vmem:[#allocation2 + $0x38] sm:$0xff]
    %v37 = vld [vmem:[#allocation2 + $0x40] sm:$0xff]
    %v38 = vld [vmem:[#allocation2 + $0x48] sm:$0xff]
    %v39 = vld [vmem:[#allocation2 + $0x50] sm:$0xff]
    %v40 = vld [vmem:[#allocation2 + $0x58] sm:$0xff]
    %v41 = vld [vmem:[#allocation2 + $0x60] sm:$0xff]
    %v42 = vld [vmem:[#allocation2 + $0x68] sm:$0xff]
    %v43 = vld [vmem:[#allocation2 + $0x70] sm:$0xff]
    %v44 = vld [vmem:[#allocation2 + $0x78] sm:$0xff]
    %v45 = vld [vmem:[#allocation2 + $0x80] sm:$0xff]
    %v46 = vld [vmem:[#allocation2 + $0x88] sm:$0xff]
    %v47 = vld [vmem:[#allocation2 + $0x90] sm:$0xff]
    %v48 = vld [vmem:[#allocation2 + $0x98] sm:$0xff]
    %v49 = vld [vmem:[#allocation2 + $0xa0] sm:$0xff]
    %v50 = vld [vmem:[#allocation2 + $0xa8] sm:$0xff]
    %v51 = vld [vmem:[#allocation2 + $0xb0] sm:$0xff]
    %v52 = vld [vmem:[#allocation2 + $0xb8] sm:$0xff]
    %v53 = vld [vmem:[#allocation2 + $0xc0] sm:$0xff]
    %v54 = vld [vmem:[#allocation2 + $0xc8] sm:$0xff]
    %v55 = vld [vmem:[#allocation2 + $0xd0] sm:$0xff]
    %v56 = vld [vmem:[#allocation2 + $0xd8] sm:$0xff]
    %v57 = vld [vmem:[#allocation2 + $0xe0] sm:$0xff]
    %v58 = vld [vmem:[#allocation2 + $0xe8] sm:$0xff]
    %v59 = vld [vmem:[#allocation2 + $0xf0] sm:$0xff]
    %v60 = vld [vmem:[#allocation2 + $0xf8] sm:$0xff]
    %v61 = vld [vmem:[#allocation2 + $0x100] sm:$0xff]
    %v62 = vld [vmem:[#allocation2 + $0x108] sm:$0xff]
    %v63 = vld [vmem:[#allocation2 + $0x110] sm:$0xff]
    %v64 = vld [vmem:[#allocation2 + $0x118] sm:$0xff]
    %v65 = vld [vmem:[#allocation2 + $0x120] sm:$0xff]
    %v66 = vld [vmem:[#allocation2 + $0x128] sm:$0xff]
    %v67 = vld [vmem:[#allocation2 + $0x130] sm:$0xff]
    %v68 = vld [vmem:[#allocation2 + $0x138] sm:$0xff]
    %v69 = vld [vmem:[#allocation2 + $0x140] sm:$0xff]
    %v70 = vld [vmem:[#allocation2 + $0x148] sm:$0xff]
    %v71 = vld [vmem:[#allocation2 + $0x150] sm:$0xff]
    %v72 = vld [vmem:[#allocation2 + $0x158] sm:$0xff]
    %v73 = vld [vmem:[#allocation2 + $0x160] sm:$0xff]
    %v74 = vld [vmem:[#allocation2 + $0x168] sm:$0xff]
    %v75 = vld [vmem:[#allocation2 + $0x170] sm:$0xff]
    %v76 = vld [vmem:[#allocation2 + $0x178] sm:$0xff]
    %v77 = vld [vmem:[#allocation2 + $0x180] sm:$0xff]
    %v78 = vld [vmem:[#allocation2 + $0x188] sm:$0xff]
    %v79 = vld [vmem:[#allocation2 + $0x190] sm:$0xff]
    %v80 = vld [vmem:[#allocation2 + $0x198] sm:$0xff]
    %v81 = vld [vmem:[#allocation2 + $0x1a0] sm:$0xff]
    %v82 = vld [vmem:[#allocation2 + $0x1a8] sm:$0xff]
    %v83 = vld [vmem:[#allocation2 + $0x1b0] sm:$0xff]
    %v84 = vld [vmem:[#allocation2 + $0x1b8] sm:$0xff]
    %v85 = vld [vmem:[#allocation2 + $0x1c0] sm:$0xff]
    %v86 = vld [vmem:[#allocation2 + $0x1c8] sm:$0xff]
    %v87 = vld [vmem:[#allocation2 + $0x1d0] sm:$0xff]
    %v88 = vld [vmem:[#allocation2 + $0x1d8] sm:$0xff]
    %v89 = vld [vmem:[#allocation2 + $0x1e0] sm:$0xff]
    %v90 = vld [vmem:[#allocation2 + $0x1e8] sm:$0xff]
    %v91 = vld [vmem:[#allocation2 + $0x1f0] sm:$0xff]
    %v92 = vld [vmem:[#allocation2 + $0x1f8] sm:$0xff]
    %v93 = vld [vmem:[#allocation2 + $0x200] sm:$0xff]
    %v94 = vld [vmem:[#allocation2 + $0x208] sm:$0xff]
    %v95 = vld [vmem:[#allocation2 + $0x210] sm:$0xff]
    %v96 = vld [vmem:[#allocation2 + $0x218] sm:$0xff]
    %v97 = vld [vmem:[#allocation2 + $0x220] sm:$0xff]
    %v98 = vld [vmem:[#allocation2 + $0x228] sm:$0xff]
    %v99 = vld [vmem:[#allocation2 + $0x230] sm:$0xff]
    %v100 = vld [vmem:[#allocation2 + $0x238] sm:$0xff]
    %v101 = vld [vmem:[#allocation2 + $0x240] sm:$0xff]
    %v102 = vld [vmem:[#allocation2 + $0x248] sm:$0xff]
    %v103 = vld [vmem:[#allocation2 + $0x250] sm:$0xff]
    %v104 = vld [vmem:[#allocation2 + $0x258] sm:$0xff]
    %v105 = vld [vmem:[#allocation2 + $0x260] sm:$0xff]
    %v106 = vld [vmem:[#allocation2 + $0x268] sm:$0xff]
    %v107 = vld [vmem:[#allocation2 + $0x270] sm:$0xff]
    %v108 = vld [vmem:[#allocation2 + $0x278] sm:$0xff]
    %v109 = vld [vmem:[#allocation2 + $0x280] sm:$0xff]
    %v110 = vld [vmem:[#allocation2 + $0x288] sm:$0xff]
    %v111 = vld [vmem:[#allocation2 + $0x290] sm:$0xff]
    %v112 = vld [vmem:[#allocation2 + $0x298] sm:$0xff]
    %v113 = vld [vmem:[#allocation2 + $0x2a0] sm:$0xff]
    %v114 = vld [vmem:[#allocation2 + $0x2a8] sm:$0xff]
    %v115 = vld [vmem:[#allocation2 + $0x2b0] sm:$0xff]
    %v116 = vld [vmem:[#allocation2 + $0x2b8] sm:$0xff]
    %v117 = vld [vmem:[#allocation2 + $0x2c0] sm:$0xff]
    %v118 = vld [vmem:[#allocation2 + $0x2c8] sm:$0xff]
    %v119 = vld [vmem:[#allocation2 + $0x2d0] sm:$0xff]
    %v120 = vld [vmem:[#allocation2 + $0x2d8] sm:$0xff]
    %v121 = vld [vmem:[#allocation2 + $0x2e0] sm:$0xff]
    %v122 = vld [vmem:[#allocation2 + $0x2e8] sm:$0xff]
    %v123 = vld [vmem:[#allocation2 + $0x2f0] sm:$0xff]
    %v124 = vld [vmem:[#allocation2 + $0x2f8] sm:$0xff]
    %v125 = vld [vmem:[#allocation2 + $0x300] sm:$0xff]
    %v126 = vld [vmem:[#allocation2 + $0x308] sm:$0xff]
    %v127 = vld [vmem:[#allocation2 + $0x310] sm:$0xff]
    %v128 = vld [vmem:[#allocation2 + $0x318] sm:$0xff]
    %v129 = vld [vmem:[#allocation2 + $0x320] sm:$0xff]
    %v130 = vld [vmem:[#allocation2 + $0x328] sm:$0xff]
    %v131 = vld [vmem:[#allocation2 + $0x330] sm:$0xff]
    %v132 = vld [vmem:[#allocation2 + $0x338] sm:$0xff]
    %v133 = vld [vmem:[#allocation2 + $0x340] sm:$0xff]
    %v134 = vld [vmem:[#allocation2 + $0x348] sm:$0xff]
    %v135 = vld [vmem:[#allocation2 + $0x350] sm:$0xff]
    %v136 = vld [vmem:[#allocation2 + $0x358] sm:$0xff]
    %v137 = vld [vmem:[#allocation2 + $0x360] sm:$0xff]
    %v138 = vld [vmem:[#allocation2 + $0x368] sm:$0xff]
    %v139 = vld [vmem:[#allocation2 + $0x370] sm:$0xff]
    %v140 = vld [vmem:[#allocation2 + $0x378] sm:$0xff]
    %v141 = vld [vmem:[#allocation2 + $0x380] sm:$0xff]
    %v142 = vld [vmem:[#allocation2 + $0x388] sm:$0xff]
    %v143 = vld [vmem:[#allocation2 + $0x390] sm:$0xff]
    %v144 = vld [vmem:[#allocation2 + $0x398] sm:$0xff]
    %v145 = vld [vmem:[#allocation2 + $0x3a0] sm:$0xff]
    %v146 = vld [vmem:[#allocation2 + $0x3a8] sm:$0xff]
    %v147 = vld [vmem:[#allocation2 + $0x3b0] sm:$0xff]
    %v148 = vld [vmem:[#allocation2 + $0x3b8] sm:$0xff]
    %v149 = vld [vmem:[#allocation2 + $0x3c0] sm:$0xff]
    %v150 = vld [vmem:[#allocation2 + $0x3c8] sm:$0xff]
    %v151 = vld [vmem:[#allocation2 + $0x3d0] sm:$0xff]
    %v152 = vld [vmem:[#allocation2 + $0x3d8] sm:$0xff]
    %v153 = vld [vmem:[#allocation2 + $0x3e0] sm:$0xff]
    %v154 = vld [vmem:[#allocation2 + $0x3e8] sm:$0xff]
    %v155 = vld [vmem:[#allocation2 + $0x3f0] sm:$0xff]
    %v156 = vld [vmem:[#allocation2 + $0x3f8] sm:$0xff]
    %v157 = vld [vmem:[#allocation2 + $0x400] sm:$0xff]
    %v158 = vld [vmem:[#allocation2 + $0x408] sm:$0xff]
    %v159 = vld [vmem:[#allocation2 + $0x410] sm:$0xff]
    %v160 = vld [vmem:[#allocation2 + $0x418] sm:$0xff]
    %v161 = vld [vmem:[#allocation2 + $0x420] sm:$0xff]
    %v162 = vld [vmem:[#allocation2 + $0x428] sm:$0xff]
    %v163 = vld [vmem:[#allocation2 + $0x430] sm:$0xff]
    %v164 = vld [vmem:[#allocation2 + $0x438] sm:$0xff]
    %v165 = vld [vmem:[#allocation2 + $0x440] sm:$0xff]
    %v166 = vld [vmem:[#allocation2 + $0x448] sm:$0xff]
    %v167 = vld [vmem:[#allocation2 + $0x450] sm:$0xff]
    %v168 = vld [vmem:[#allocation2 + $0x458] sm:$0xff]
    %v169 = vld [vmem:[#allocation2 + $0x460] sm:$0xff]
    %v170 = vld [vmem:[#allocation2 + $0x468] sm:$0xff]
    %v171 = vld [vmem:[#allocation2 + $0x470] sm:$0xff]
    %v172 = vld [vmem:[#allocation2 + $0x478] sm:$0xff]
    %v173 = vld [vmem:[#allocation2 + $0x480] sm:$0xff]
    %v174 = vld [vmem:[#allocation2 + $0x488] sm:$0xff]
    %v175 = vld [vmem:[#allocation2 + $0x490] sm:$0xff]
    %v176 = vld [vmem:[#allocation2 + $0x498] sm:$0xff]
    %v177 = vld [vmem:[#allocation2 + $0x4a0] sm:$0xff]
    %v178 = vld [vmem:[#allocation2 + $0x4a8] sm:$0xff]
    %v179 = vld [vmem:[#allocation2 + $0x4b0] sm:$0xff]
    %v180 = vld [vmem:[#allocation2 + $0x4b8] sm:$0xff]
    %v181 = vld [vmem:[#allocation2 + $0x4c0] sm:$0xff]
    %v182 = vld [vmem:[#allocation2 + $0x4c8] sm:$0xff]
    %v183 = vld [vmem:[#allocation2 + $0x4d0] sm:$0xff]
    %v184 = vld [vmem:[#allocation2 + $0x4d8] sm:$0xff]
    %v185 = vld [vmem:[#allocation2 + $0x4e0] sm:$0xff]
    %v186 = vld [vmem:[#allocation2 + $0x4e8] sm:$0xff]
    %v187 = vld [vmem:[#allocation2 + $0x4f0] sm:$0xff]
    %v188 = vld [vmem:[#allocation2 + $0x4f8] sm:$0xff]
    %v189 = vld [vmem:[#allocation2 + $0x500] sm:$0xff]
    %v190 = vld [vmem:[#allocation2 + $0x508] sm:$0xff]
    %v191 = vld [vmem:[#allocation2 + $0x510] sm:$0xff]
    %v192 = vld [vmem:[#allocation2 + $0x518] sm:$0xff]
    %v193 = vld [vmem:[#allocation2 + $0x520] sm:$0xff]
    %v194 = vld [vmem:[#allocation2 + $0x528] sm:$0xff]
    %v195 = vld [vmem:[#allocation2 + $0x530] sm:$0xff]
    %v196 = vld [vmem:[#allocation2 + $0x538] sm:$0xff]
    %v197 = vadd.f32 %v29, %v30
    %v198 = vadd.f32 %v197, %v31
    %v199 = vadd.f32 %v198, %v32
    %v200 = vadd.f32 %v199, %v33
    %v201 = vadd.f32 %v200, %v34
    %vm202 = vcmask 130048
    %v203 = vsel %vm202, %v35, 0.0
    %v204 = vadd.f32 %v201, %v203
    %205 = vadd.xlane.f32.xlu0 %v204
    %v206 = vpop.xlane.xlu0 %205
    %v207 = vadd.f32 %v36, %v37
    %v208 = vadd.f32 %v207, %v38
    %v209 = vadd.f32 %v208, %v39
    %v210 = vadd.f32 %v209, %v40
    %v211 = vadd.f32 %v210, %v41
    %v212 = vsel %vm202, %v42, 0.0
    %v213 = vadd.f32 %v211, %v212
    %214 = vadd.xlane.f32.xlu0 %v213
    %v215 = vpop.xlane.xlu0 %214
    %v216 = vadd.f32 %v43, %v44
    %v217 = vadd.f32 %v216, %v45
    %v218 = vadd.f32 %v217, %v46
    %v219 = vadd.f32 %v218, %v47
    %v220 = vadd.f32 %v219, %v48
    %v221 = vsel %vm202, %v49, 0.0
    %v222 = vadd.f32 %v220, %v221
    %223 = vadd.xlane.f32.xlu0 %v222
    %v224 = vpop.xlane.xlu0 %223
    %v225 = vadd.f32 %v50, %v51
    %v226 = vadd.f32 %v225, %v52
    %v227 = vadd.f32 %v226, %v53
    %v228 = vadd.f32 %v227, %v54
    %v229 = vadd.f32 %v228, %v55
    %v230 = vsel %vm202, %v56, 0.0
    %v231 = vadd.f32 %v229, %v230
    %232 = vadd.xlane.f32.xlu0 %v231
    %v233 = vpop.xlane.xlu0 %232
    %v234 = vadd.f32 %v57, %v58
    %v235 = vadd.f32 %v234, %v59
    %v236 = vadd.f32 %v235, %v60
    %v237 = vadd.f32 %v236, %v61
    %v238 = vadd.f32 %v237, %v62
    %v239 = vsel %vm202, %v63, 0.0
    %v240 = vadd.f32 %v238, %v239
    %241 = vadd.xlane.f32.xlu0 %v240
    %v242 = vpop.xlane.xlu0 %241
    %v243 = vadd.f32 %v64, %v65
    %v244 = vadd.f32 %v243, %v66
    %v245 = vadd.f32 %v244, %v67
    %v246 = vadd.f32 %v245, %v68
    %v247 = vadd.f32 %v246, %v69
    %v248 = vsel %vm202, %v70, 0.0
    %v249 = vadd.f32 %v247, %v248
    %250 = vadd.xlane.f32.xlu0 %v249
    %v251 = vpop.xlane.xlu0 %250
    %v252 = vadd.f32 %v71, %v72
    %v253 = vadd.f32 %v252, %v73
    %v254 = vadd.f32 %v253, %v74
    %v255 = vadd.f32 %v254, %v75
    %v256 = vadd.f32 %v255, %v76
    %v257 = vsel %vm202, %v77, 0.0
    %v258 = vadd.f32 %v256, %v257
    %259 = vadd.xlane.f32.xlu0 %v258
    %v260 = vpop.xlane.xlu0 %259
    %v261 = vadd.f32 %v78, %v79
    %v262 = vadd.f32 %v261, %v80
    %v263 = vadd.f32 %v262, %v81
    %v264 = vadd.f32 %v263, %v82
    %v265 = vadd.f32 %v264, %v83
    %v266 = vsel %vm202, %v84, 0.0
    %v267 = vadd.f32 %v265, %v266
    %268 = vadd.xlane.f32.xlu0 %v267
    %v269 = vpop.xlane.xlu0 %268
    %v270 = vadd.f32 %v85, %v86
    %v271 = vadd.f32 %v270, %v87
    %v272 = vadd.f32 %v271, %v88
    %v273 = vadd.f32 %v272, %v89
    %v274 = vadd.f32 %v273, %v90
    %v275 = vsel %vm202, %v91, 0.0
    %v276 = vadd.f32 %v274, %v275
    %277 = vadd.xlane.f32.xlu0 %v276
    %v278 = vpop.xlane.xlu0 %277
    %v279 = vadd.f32 %v92, %v93
    %v280 = vadd.f32 %v279, %v94
    %v281 = vadd.f32 %v280, %v95
    %v282 = vadd.f32 %v281, %v96
    %v283 = vadd.f32 %v282, %v97
    %v284 = vsel %vm202, %v98, 0.0
    %v285 = vadd.f32 %v283, %v284
    %286 = vadd.xlane.f32.xlu0 %v285
    %v287 = vpop.xlane.xlu0 %286
    %v288 = vadd.f32 %v99, %v100
    %v289 = vadd.f32 %v288, %v101
    %v290 = vadd.f32 %v289, %v102
    %v291 = vadd.f32 %v290, %v103
    %v292 = vadd.f32 %v291, %v104
    %v293 = vsel %vm202, %v105, 0.0
    %v294 = vadd.f32 %v292, %v293
    %295 = vadd.xlane.f32.xlu0 %v294
    %v296 = vpop.xlane.xlu0 %295
    %v297 = vadd.f32 %v106, %v107
    %v298 = vadd.f32 %v297, %v108
    %v299 = vadd.f32 %v298, %v109
    %v300 = vadd.f32 %v299, %v110
    %v301 = vadd.f32 %v300, %v111
    %v302 = vsel %vm202, %v112, 0.0
    %v303 = vadd.f32 %v301, %v302
    %304 = vadd.xlane.f32.xlu0 %v303
    %v305 = vpop.xlane.xlu0 %304
    %v306 = vadd.f32 %v113, %v114
    %v307 = vadd.f32 %v306, %v115
    %v308 = vadd.f32 %v307, %v116
    %v309 = vadd.f32 %v308, %v117
    %v310 = vadd.f32 %v309, %v118
    %v311 = vsel %vm202, %v119, 0.0
    %v312 = vadd.f32 %v310, %v311
    %313 = vadd.xlane.f32.xlu0 %v312
    %v314 = vpop.xlane.xlu0 %313
    %v315 = vadd.f32 %v120, %v121
    %v316 = vadd.f32 %v315, %v122
    %v317 = vadd.f32 %v316, %v123
    %v318 = vadd.f32 %v317, %v124
    %v319 = vadd.f32 %v318, %v125
    %v320 = vsel %vm202, %v126, 0.0
    %v321 = vadd.f32 %v319, %v320
    %322 = vadd.xlane.f32.xlu0 %v321
    %v323 = vpop.xlane.xlu0 %322
    %v324 = vadd.f32 %v127, %v128
    %v325 = vadd.f32 %v324, %v129
    %v326 = vadd.f32 %v325, %v130
    %v327 = vadd.f32 %v326, %v131
    %v328 = vadd.f32 %v327, %v132
    %v329 = vsel %vm202, %v133, 0.0
    %v330 = vadd.f32 %v328, %v329
    %331 = vadd.xlane.f32.xlu0 %v330
    %v332 = vpop.xlane.xlu0 %331
    %v333 = vadd.f32 %v134, %v135
    %v334 = vadd.f32 %v333, %v136
    %v335 = vadd.f32 %v334, %v137
    %v336 = vadd.f32 %v335, %v138
    %v337 = vadd.f32 %v336, %v139
    %v338 = vsel %vm202, %v140, 0.0
    %v339 = vadd.f32 %v337, %v338
    %340 = vadd.xlane.f32.xlu0 %v339
    %v341 = vpop.xlane.xlu0 %340
    %v342 = vadd.f32 %v141, %v142
    %v343 = vadd.f32 %v342, %v143
    %v344 = vadd.f32 %v343, %v144
    %v345 = vadd.f32 %v344, %v145
    %v346 = vadd.f32 %v345, %v146
    %v347 = vsel %vm202, %v147, 0.0
    %v348 = vadd.f32 %v346, %v347
    %349 = vadd.xlane.f32.xlu0 %v348
    %v350 = vpop.xlane.xlu0 %349
    %v351 = vadd.f32 %v148, %v149
    %v352 = vadd.f32 %v351, %v150
    %v353 = vadd.f32 %v352, %v151
    %v354 = vadd.f32 %v353, %v152
    %v355 = vadd.f32 %v354, %v153
    %v356 = vsel %vm202, %v154, 0.0
    %v357 = vadd.f32 %v355, %v356
    %358 = vadd.xlane.f32.xlu0 %v357
    %v359 = vpop.xlane.xlu0 %358
    %v360 = vadd.f32 %v155, %v156
    %v361 = vadd.f32 %v360, %v157
    %v362 = vadd.f32 %v361, %v158
    %v363 = vadd.f32 %v362, %v159
    %v364 = vadd.f32 %v363, %v160
    %v365 = vsel %vm202, %v161, 0.0
    %v366 = vadd.f32 %v364, %v365
    %367 = vadd.xlane.f32.xlu0 %v366
    %v368 = vpop.xlane.xlu0 %367
    %v369 = vadd.f32 %v162, %v163
    %v370 = vadd.f32 %v369, %v164
    %v371 = vadd.f32 %v370, %v165
    %v372 = vadd.f32 %v371, %v166
    %v373 = vadd.f32 %v372, %v167
    %v374 = vsel %vm202, %v168, 0.0
    %v375 = vadd.f32 %v373, %v374
    %376 = vadd.xlane.f32.xlu0 %v375
    %v377 = vpop.xlane.xlu0 %376
    %v378 = vadd.f32 %v169, %v170
    %v379 = vadd.f32 %v378, %v171
    %v380 = vadd.f32 %v379, %v172
    %v381 = vadd.f32 %v380, %v173
    %v382 = vadd.f32 %v381, %v174
    %v383 = vsel %vm202, %v175, 0.0
    %v384 = vadd.f32 %v382, %v383
    %385 = vadd.xlane.f32.xlu0 %v384
    %v386 = vpop.xlane.xlu0 %385
    %v387 = vadd.f32 %v176, %v177
    %v388 = vadd.f32 %v387, %v178
    %v389 = vadd.f32 %v388, %v179
    %v390 = vadd.f32 %v389, %v180
    %v391 = vadd.f32 %v390, %v181
    %v392 = vsel %vm202, %v182, 0.0
    %v393 = vadd.f32 %v391, %v392
    %394 = vadd.xlane.f32.xlu0 %v393
    %v395 = vpop.xlane.xlu0 %394
    %v396 = vadd.f32 %v183, %v184
    %v397 = vadd.f32 %v396, %v185
    %v398 = vadd.f32 %v397, %v186
    %v399 = vadd.f32 %v398, %v187
    %v400 = vadd.f32 %v399, %v188
    %v401 = vsel %vm202, %v189, 0.0
    %v402 = vadd.f32 %v400, %v401
    %403 = vadd.xlane.f32.xlu0 %v402
    %v404 = vpop.xlane.xlu0 %403
    %v405 = vadd.f32 %v190, %v191
    %v406 = vadd.f32 %v405, %v192
    %v407 = vadd.f32 %v406, %v193
    %v408 = vadd.f32 %v407, %v194
    %v409 = vadd.f32 %v408, %v195
    %v410 = vsel %vm202, %v196, 0.0
    %v411 = vadd.f32 %v409, %v410
    %412 = vadd.xlane.f32.xlu0 %v411
    %v413 = vpop.xlane.xlu0 %412
    %v414 = vrcp.pop 784.0
    %v415 = vmul.f32 %v206, %v414
    %v416 = vmul.f32 %v215, %v414
    %v417 = vmul.f32 %v224, %v414
    %v418 = vmul.f32 %v233, %v414
    %v419 = vmul.f32 %v242, %v414
    %v420 = vmul.f32 %v251, %v414
    %v421 = vmul.f32 %v260, %v414
    %v422 = vmul.f32 %v269, %v414
    %v423 = vmul.f32 %v278, %v414
    %v424 = vmul.f32 %v287, %v414
    %v425 = vmul.f32 %v296, %v414
    %v426 = vmul.f32 %v305, %v414
    %v427 = vmul.f32 %v314, %v414
    %v428 = vmul.f32 %v323, %v414
    %v429 = vmul.f32 %v332, %v414
    %v430 = vmul.f32 %v341, %v414
    %v431 = vmul.f32 %v350, %v414
    %v432 = vmul.f32 %v359, %v414
    %v433 = vmul.f32 %v368, %v414
    %v434 = vmul.f32 %v377, %v414
    %v435 = vmul.f32 %v386, %v414
    %v436 = vmul.f32 %v395, %v414
    %v437 = vmul.f32 %v404, %v414
    %v438 = vmul.f32 %v413, %v414
    %v439 = vsub.f32 %v29, %v415
    %v440 = vsub.f32 %v30, %v415
    %v441 = vsub.f32 %v31, %v415
    %v442 = vsub.f32 %v32, %v415
    %v443 = vsub.f32 %v33, %v415
    %v444 = vsub.f32 %v34, %v415
    %v445 = vsub.f32 %v35, %v415
    %v446 = vsub.f32 %v36, %v416
    %v447 = vsub.f32 %v37, %v416
    %v448 = vsub.f32 %v38, %v416
    %v449 = vsub.f32 %v39, %v416
    %v450 = vsub.f32 %v40, %v416
    %v451 = vsub.f32 %v41, %v416
    %v452 = vsub.f32 %v42, %v416
    %v453 = vsub.f32 %v43, %v417
    %v454 = vsub.f32 %v44, %v417
    %v455 = vsub.f32 %v45, %v417
    %v456 = vsub.f32 %v46, %v417
    %v457 = vsub.f32 %v47, %v417
    %v458 = vsub.f32 %v48, %v417
    %v459 = vsub.f32 %v49, %v417
    %v460 = vsub.f32 %v50, %v418
    %v461 = vsub.f32 %v51, %v418
    %v462 = vsub.f32 %v52, %v418
    %v463 = vsub.f32 %v53, %v418
    %v464 = vsub.f32 %v54, %v418
    %v465 = vsub.f32 %v55, %v418
    %v466 = vsub.f32 %v56, %v418
    %v467 = vsub.f32 %v57, %v419
    %v468 = vsub.f32 %v58, %v419
    %v469 = vsub.f32 %v59, %v419
    %v470 = vsub.f32 %v60, %v419
    %v471 = vsub.f32 %v61, %v419
    %v472 = vsub.f32 %v62, %v419
    %v473 = vsub.f32 %v63, %v419
    %v474 = vsub.f32 %v64, %v420
    %v475 = vsub.f32 %v65, %v420
    %v476 = vsub.f32 %v66, %v420
    %v477 = vsub.f32 %v67, %v420
    %v478 = vsub.f32 %v68, %v420
    %v479 = vsub.f32 %v69, %v420
    %v480 = vsub.f32 %v70, %v420
    %v481 = vsub.f32 %v71, %v421
    %v482 = vsub.f32 %v72, %v421
    %v483 = vsub.f32 %v73, %v421
    %v484 = vsub.f32 %v74, %v421
    %v485 = vsub.f32 %v75, %v421
    %v486 = vsub.f32 %v76, %v421
    %v487 = vsub.f32 %v77, %v421
    %v488 = vsub.f32 %v78, %v422
    %v489 = vsub.f32 %v79, %v422
    %v490 = vsub.f32 %v80, %v422
    %v491 = vsub.f32 %v81, %v422
    %v492 = vsub.f32 %v82, %v422
    %v493 = vsub.f32 %v83, %v422
    %v494 = vsub.f32 %v84, %v422
    %v495 = vsub.f32 %v85, %v423
    %v496 = vsub.f32 %v86, %v423
    %v497 = vsub.f32 %v87, %v423
    %v498 = vsub.f32 %v88, %v423
    %v499 = vsub.f32 %v89, %v423
    %v500 = vsub.f32 %v90, %v423
    %v501 = vsub.f32 %v91, %v423
    %v502 = vsub.f32 %v92, %v424
    %v503 = vsub.f32 %v93, %v424
    %v504 = vsub.f32 %v94, %v424
    %v505 = vsub.f32 %v95, %v424
    %v506 = vsub.f32 %v96, %v424
    %v507 = vsub.f32 %v97, %v424
    %v508 = vsub.f32 %v98, %v424
    %v509 = vsub.f32 %v99, %v425
    %v510 = vsub.f32 %v100, %v425
    %v511 = vsub.f32 %v101, %v425
    %v512 = vsub.f32 %v102, %v425
    %v513 = vsub.f32 %v103, %v425
    %v514 = vsub.f32 %v104, %v425
    %v515 = vsub.f32 %v105, %v425
    %v516 = vsub.f32 %v106, %v426
    %v517 = vsub.f32 %v107, %v426
    %v518 = vsub.f32 %v108, %v426
    %v519 = vsub.f32 %v109, %v426
    %v520 = vsub.f32 %v110, %v426
    %v521 = vsub.f32 %v111, %v426
    %v522 = vsub.f32 %v112, %v426
    %v523 = vsub.f32 %v113, %v427
    %v524 = vsub.f32 %v114, %v427
    %v525 = vsub.f32 %v115, %v427
    %v526 = vsub.f32 %v116, %v427
    %v527 = vsub.f32 %v117, %v427
    %v528 = vsub.f32 %v118, %v427
    %v529 = vsub.f32 %v119, %v427
    %v530 = vsub.f32 %v120, %v428
    %v531 = vsub.f32 %v121, %v428
    %v532 = vsub.f32 %v122, %v428
    %v533 = vsub.f32 %v123, %v428
    %v534 = vsub.f32 %v124, %v428
    %v535 = vsub.f32 %v125, %v428
    %v536 = vsub.f32 %v126, %v428
    %v537 = vsub.f32 %v127, %v429
    %v538 = vsub.f32 %v128, %v429
    %v539 = vsub.f32 %v129, %v429
    %v540 = vsub.f32 %v130, %v429
    %v541 = vsub.f32 %v131, %v429
    %v542 = vsub.f32 %v132, %v429
    %v543 = vsub.f32 %v133, %v429
    %v544 = vsub.f32 %v134, %v430
    %v545 = vsub.f32 %v135, %v430
    %v546 = vsub.f32 %v136, %v430
    %v547 = vsub.f32 %v137, %v430
    %v548 = vsub.f32 %v138, %v430
    %v549 = vsub.f32 %v139, %v430
    %v550 = vsub.f32 %v140, %v430
    %v551 = vsub.f32 %v141, %v431
    %v552 = vsub.f32 %v142, %v431
    %v553 = vsub.f32 %v143, %v431
    %v554 = vsub.f32 %v144, %v431
    %v555 = vsub.f32 %v145, %v431
    %v556 = vsub.f32 %v146, %v431
    %v557 = vsub.f32 %v147, %v431
    %v558 = vsub.f32 %v148, %v432
    %v559 = vsub.f32 %v149, %v432
    %v560 = vsub.f32 %v150, %v432
    %v561 = vsub.f32 %v151, %v432
    %v562 = vsub.f32 %v152, %v432
    %v563 = vsub.f32 %v153, %v432
    %v564 = vsub.f32 %v154, %v432
    %v565 = vsub.f32 %v155, %v433
    %v566 = vsub.f32 %v156, %v433
    %v567 = vsub.f32 %v157, %v433
    %v568 = vsub.f32 %v158, %v433
    %v569 = vsub.f32 %v159, %v433
    %v570 = vsub.f32 %v160, %v433
    %v571 = vsub.f32 %v161, %v433
    %v572 = vsub.f32 %v162, %v434
    %v573 = vsub.f32 %v163, %v434
    %v574 = vsub.f32 %v164, %v434
    %v575 = vsub.f32 %v165, %v434
    %v576 = vsub.f32 %v166, %v434
    %v577 = vsub.f32 %v167, %v434
    %v578 = vsub.f32 %v168, %v434
    %v579 = vsub.f32 %v169, %v435
    %v580 = vsub.f32 %v170, %v435
    %v581 = vsub.f32 %v171, %v435
    %v582 = vsub.f32 %v172, %v435
    %v583 = vsub.f32 %v173, %v435
    %v584 = vsub.f32 %v174, %v435
    %v585 = vsub.f32 %v175, %v435
    %v586 = vsub.f32 %v176, %v436
    %v587 = vsub.f32 %v177, %v436
    %v588 = vsub.f32 %v178, %v436
    %v589 = vsub.f32 %v179, %v436
    %v590 = vsub.f32 %v180, %v436
    %v591 = vsub.f32 %v181, %v436
    %v592 = vsub.f32 %v182, %v436
    %v593 = vsub.f32 %v183, %v437
    %v594 = vsub.f32 %v184, %v437
    %v595 = vsub.f32 %v185, %v437
    %v596 = vsub.f32 %v186, %v437
    %v597 = vsub.f32 %v187, %v437
    %v598 = vsub.f32 %v188, %v437
    %v599 = vsub.f32 %v189, %v437
    %v600 = vsub.f32 %v190, %v438
    %v601 = vsub.f32 %v191, %v438
    %v602 = vsub.f32 %v192, %v438
    %v603 = vsub.f32 %v193, %v438
    %v604 = vsub.f32 %v194, %v438
    %v605 = vsub.f32 %v195, %v438
    %v606 = vsub.f32 %v196, %v438
    %v607 = vmul.f32 %v439, %v439
    %v608 = vmul.f32 %v440, %v440
    %v609 = vmul.f32 %v441, %v441
    %v610 = vmul.f32 %v442, %v442
    %v611 = vmul.f32 %v443, %v443
    %v612 = vmul.f32 %v444, %v444
    %v613 = vmul.f32 %v445, %v445
    %v614 = vmul.f32 %v446, %v446
    %v615 = vmul.f32 %v447, %v447
    %v616 = vmul.f32 %v448, %v448
    %v617 = vmul.f32 %v449, %v449
    %v618 = vmul.f32 %v450, %v450
    %v619 = vmul.f32 %v451, %v451
    %v620 = vmul.f32 %v452, %v452
    %v621 = vmul.f32 %v453, %v453
    %v622 = vmul.f32 %v454, %v454
    %v623 = vmul.f32 %v455, %v455
    %v624 = vmul.f32 %v456, %v456
    %v625 = vmul.f32 %v457, %v457
    %v626 = vmul.f32 %v458, %v458
    %v627 = vmul.f32 %v459, %v459
    %v628 = vmul.f32 %v460, %v460
    %v629 = vmul.f32 %v461, %v461
    %v630 = vmul.f32 %v462, %v462
    %v631 = vmul.f32 %v463, %v463
    %v632 = vmul.f32 %v464, %v464
    %v633 = vmul.f32 %v465, %v465
    %v634 = vmul.f32 %v466, %v466
    %v635 = vmul.f32 %v467, %v467
    %v636 = vmul.f32 %v468, %v468
    %v637 = vmul.f32 %v469, %v469
    %v638 = vmul.f32 %v470, %v470
    %v639 = vmul.f32 %v471, %v471
    %v640 = vmul.f32 %v472, %v472
    %v641 = vmul.f32 %v473, %v473
    %v642 = vmul.f32 %v474, %v474
    %v643 = vmul.f32 %v475, %v475
    %v644 = vmul.f32 %v476, %v476
    %v645 = vmul.f32 %v477, %v477
    %v646 = vmul.f32 %v478, %v478
    %v647 = vmul.f32 %v479, %v479
    %v648 = vmul.f32 %v480, %v480
    %v649 = vmul.f32 %v481, %v481
    %v650 = vmul.f32 %v482, %v482
    %v651 = vmul.f32 %v483, %v483
    %v652 = vmul.f32 %v484, %v484
    %v653 = vmul.f32 %v485, %v485
    %v654 = vmul.f32 %v486, %v486
    %v655 = vmul.f32 %v487, %v487
    %v656 = vmul.f32 %v488, %v488
    %v657 = vmul.f32 %v489, %v489
    %v658 = vmul.f32 %v490, %v490
    %v659 = vmul.f32 %v491, %v491
    %v660 = vmul.f32 %v492, %v492
    %v661 = vmul.f32 %v493, %v493
    %v662 = vmul.f32 %v494, %v494
    %v663 = vmul.f32 %v495, %v495
    %v664 = vmul.f32 %v496, %v496
    %v665 = vmul.f32 %v497, %v497
    %v666 = vmul.f32 %v498, %v498
    %v667 = vmul.f32 %v499, %v499
    %v668 = vmul.f32 %v500, %v500
    %v669 = vmul.f32 %v501, %v501
    %v670 = vmul.f32 %v502, %v502
    %v671 = vmul.f32 %v503, %v503
    %v672 = vmul.f32 %v504, %v504
    %v673 = vmul.f32 %v505, %v505
    %v674 = vmul.f32 %v506, %v506
    %v675 = vmul.f32 %v507, %v507
    %v676 = vmul.f32 %v508, %v508
    %v677 = vmul.f32 %v509, %v509
    %v678 = vmul.f32 %v510, %v510
    %v679 = vmul.f32 %v511, %v511
    %v680 = vmul.f32 %v512, %v512
    %v681 = vmul.f32 %v513, %v513
    %v682 = vmul.f32 %v514, %v514
    %v683 = vmul.f32 %v515, %v515
    %v684 = vmul.f32 %v516, %v516
    %v685 = vmul.f32 %v517, %v517
    %v686 = vmul.f32 %v518, %v518
    %v687 = vmul.f32 %v519, %v519
    %v688 = vmul.f32 %v520, %v520
    %v689 = vmul.f32 %v521, %v521
    %v690 = vmul.f32 %v522, %v522
    %v691 = vmul.f32 %v523, %v523
    %v692 = vmul.f32 %v524, %v524
    %v693 = vmul.f32 %v525, %v525
    %v694 = vmul.f32 %v526, %v526
    %v695 = vmul.f32 %v527, %v527
    %v696 = vmul.f32 %v528, %v528
    %v697 = vmul.f32 %v529, %v529
    %v698 = vmul.f32 %v530, %v530
    %v699 = vmul.f32 %v531, %v531
    %v700 = vmul.f32 %v532, %v532
    %v701 = vmul.f32 %v533, %v533
    %v702 = vmul.f32 %v534, %v534
    %v703 = vmul.f32 %v535, %v535
    %v704 = vmul.f32 %v536, %v536
    %v705 = vmul.f32 %v537, %v537
    %v706 = vmul.f32 %v538, %v538
    %v707 = vmul.f32 %v539, %v539
    %v708 = vmul.f32 %v540, %v540
    %v709 = vmul.f32 %v541, %v541
    %v710 = vmul.f32 %v542, %v542
    %v711 = vmul.f32 %v543, %v543
    %v712 = vmul.f32 %v544, %v544
    %v713 = vmul.f32 %v545, %v545
    %v714 = vmul.f32 %v546, %v546
    %v715 = vmul.f32 %v547, %v547
    %v716 = vmul.f32 %v548, %v548
    %v717 = vmul.f32 %v549, %v549
    %v718 = vmul.f32 %v550, %v550
    %v719 = vmul.f32 %v551, %v551
    %v720 = vmul.f32 %v552, %v552
    %v721 = vmul.f32 %v553, %v553
    %v722 = vmul.f32 %v554, %v554
    %v723 = vmul.f32 %v555, %v555
    %v724 = vmul.f32 %v556, %v556
    %v725 = vmul.f32 %v557, %v557
    %v726 = vmul.f32 %v558, %v558
    %v727 = vmul.f32 %v559, %v559
    %v728 = vmul.f32 %v560, %v560
    %v729 = vmul.f32 %v561, %v561
    %v730 = vmul.f32 %v562, %v562
    %v731 = vmul.f32 %v563, %v563
    %v732 = vmul.f32 %v564, %v564
    %v733 = vmul.f32 %v565, %v565
    %v734 = vmul.f32 %v566, %v566
    %v735 = vmul.f32 %v567, %v567
    %v736 = vmul.f32 %v568, %v568
    %v737 = vmul.f32 %v569, %v569
    %v738 = vmul.f32 %v570, %v570
    %v739 = vmul.f32 %v571, %v571
    %v740 = vmul.f32 %v572, %v572
    %v741 = vmul.f32 %v573, %v573
    %v742 = vmul.f32 %v574, %v574
    %v743 = vmul.f32 %v575, %v575
    %v744 = vmul.f32 %v576, %v576
    %v745 = vmul.f32 %v577, %v577
    %v746 = vmul.f32 %v578, %v578
    %v747 = vmul.f32 %v579, %v579
    %v748 = vmul.f32 %v580, %v580
    %v749 = vmul.f32 %v581, %v581
    %v750 = vmul.f32 %v582, %v582
    %v751 = vmul.f32 %v583, %v583
    %v752 = vmul.f32 %v584, %v584
    %v753 = vmul.f32 %v585, %v585
    %v754 = vmul.f32 %v586, %v586
    %v755 = vmul.f32 %v587, %v587
    %v756 = vmul.f32 %v588, %v588
    %v757 = vmul.f32 %v589, %v589
    %v758 = vmul.f32 %v590, %v590
    %v759 = vmul.f32 %v591, %v591
    %v760 = vmul.f32 %v592, %v592
    %v761 = vmul.f32 %v593, %v593
    %v762 = vmul.f32 %v594, %v594
    %v763 = vmul.f32 %v595, %v595
    %v764 = vmul.f32 %v596, %v596
    %v765 = vmul.f32 %v597, %v597
    %v766 = vmul.f32 %v598, %v598
    %v767 = vmul.f32 %v599, %v599
    %v768 = vmul.f32 %v600, %v600
    %v769 = vmul.f32 %v601, %v601
    %v770 = vmul.f32 %v602, %v602
    %v771 = vmul.f32 %v603, %v603
    %v772 = vmul.f32 %v604, %v604
    %v773 = vmul.f32 %v605, %v605
    %v774 = vmul.f32 %v606, %v606
    %v775 = vadd.f32 %v607, %v608
    %v776 = vadd.f32 %v775, %v609
    %v777 = vadd.f32 %v776, %v610
    %v778 = vadd.f32 %v777, %v611
    %v779 = vadd.f32 %v778, %v612
    %v780 = vsel %vm202, %v613, 0.0
    %v781 = vadd.f32 %v779, %v780
    %782 = vadd.xlane.f32.xlu0 %v781
    %v783 = vpop.xlane.xlu0 %782
    %v784 = vadd.f32 %v614, %v615
    %v785 = vadd.f32 %v784, %v616
    %v786 = vadd.f32 %v785, %v617
    %v787 = vadd.f32 %v786, %v618
    %v788 = vadd.f32 %v787, %v619
    %v789 = vsel %vm202, %v620, 0.0
    %v790 = vadd.f32 %v788, %v789
    %791 = vadd.xlane.f32.xlu0 %v790
    %v792 = vpop.xlane.xlu0 %791
    %v793 = vadd.f32 %v621, %v622
    %v794 = vadd.f32 %v793, %v623
    %v795 = vadd.f32 %v794, %v624
    %v796 = vadd.f32 %v795, %v625
    %v797 = vadd.f32 %v796, %v626
    %v798 = vsel %vm202, %v627, 0.0
    %v799 = vadd.f32 %v797, %v798
    %800 = vadd.xlane.f32.xlu0 %v799
    %v801 = vpop.xlane.xlu0 %800
    %v802 = vadd.f32 %v628, %v629
    %v803 = vadd.f32 %v802, %v630
    %v804 = vadd.f32 %v803, %v631
    %v805 = vadd.f32 %v804, %v632
    %v806 = vadd.f32 %v805, %v633
    %v807 = vsel %vm202, %v634, 0.0
    %v808 = vadd.f32 %v806, %v807
    %809 = vadd.xlane.f32.xlu0 %v808
    %v810 = vpop.xlane.xlu0 %809
    %v811 = vadd.f32 %v635, %v636
    %v812 = vadd.f32 %v811, %v637
    %v813 = vadd.f32 %v812, %v638
    %v814 = vadd.f32 %v813, %v639
    %v815 = vadd.f32 %v814, %v640
    %v816 = vsel %vm202, %v641, 0.0
    %v817 = vadd.f32 %v815, %v816
    %818 = vadd.xlane.f32.xlu0 %v817
    %v819 = vpop.xlane.xlu0 %818
    %v820 = vadd.f32 %v642, %v643
    %v821 = vadd.f32 %v820, %v644
    %v822 = vadd.f32 %v821, %v645
    %v823 = vadd.f32 %v822, %v646
    %v824 = vadd.f32 %v823, %v647
    %v825 = vsel %vm202, %v648, 0.0
    %v826 = vadd.f32 %v824, %v825
    %827 = vadd.xlane.f32.xlu0 %v826
    %v828 = vpop.xlane.xlu0 %827
    %v829 = vadd.f32 %v649, %v650
    %v830 = vadd.f32 %v829, %v651
    %v831 = vadd.f32 %v830, %v652
    %v832 = vadd.f32 %v831, %v653
    %v833 = vadd.f32 %v832, %v654
    %v834 = vsel %vm202, %v655, 0.0
    %v835 = vadd.f32 %v833, %v834
    %836 = vadd.xlane.f32.xlu0 %v835
    %v837 = vpop.xlane.xlu0 %836
    %v838 = vadd.f32 %v656, %v657
    %v839 = vadd.f32 %v838, %v658
    %v840 = vadd.f32 %v839, %v659
    %v841 = vadd.f32 %v840, %v660
    %v842 = vadd.f32 %v841, %v661
    %v843 = vsel %vm202, %v662, 0.0
    %v844 = vadd.f32 %v842, %v843
    %845 = vadd.xlane.f32.xlu0 %v844
    %v846 = vpop.xlane.xlu0 %845
    %v847 = vadd.f32 %v663, %v664
    %v848 = vadd.f32 %v847, %v665
    %v849 = vadd.f32 %v848, %v666
    %v850 = vadd.f32 %v849, %v667
    %v851 = vadd.f32 %v850, %v668
    %v852 = vsel %vm202, %v669, 0.0
    %v853 = vadd.f32 %v851, %v852
    %854 = vadd.xlane.f32.xlu0 %v853
    %v855 = vpop.xlane.xlu0 %854
    %v856 = vadd.f32 %v670, %v671
    %v857 = vadd.f32 %v856, %v672
    %v858 = vadd.f32 %v857, %v673
    %v859 = vadd.f32 %v858, %v674
    %v860 = vadd.f32 %v859, %v675
    %v861 = vsel %vm202, %v676, 0.0
    %v862 = vadd.f32 %v860, %v861
    %863 = vadd.xlane.f32.xlu0 %v862
    %v864 = vpop.xlane.xlu0 %863
    %v865 = vadd.f32 %v677, %v678
    %v866 = vadd.f32 %v865, %v679
    %v867 = vadd.f32 %v866, %v680
    %v868 = vadd.f32 %v867, %v681
    %v869 = vadd.f32 %v868, %v682
    %v870 = vsel %vm202, %v683, 0.0
    %v871 = vadd.f32 %v869, %v870
    %872 = vadd.xlane.f32.xlu0 %v871
    %v873 = vpop.xlane.xlu0 %872
    %v874 = vadd.f32 %v684, %v685
    %v875 = vadd.f32 %v874, %v686
    %v876 = vadd.f32 %v875, %v687
    %v877 = vadd.f32 %v876, %v688
    %v878 = vadd.f32 %v877, %v689
    %v879 = vsel %vm202, %v690, 0.0
    %v880 = vadd.f32 %v878, %v879
    %881 = vadd.xlane.f32.xlu0 %v880
    %v882 = vpop.xlane.xlu0 %881
    %v883 = vadd.f32 %v691, %v692
    %v884 = vadd.f32 %v883, %v693
    %v885 = vadd.f32 %v884, %v694
    %v886 = vadd.f32 %v885, %v695
    %v887 = vadd.f32 %v886, %v696
    %v888 = vsel %vm202, %v697, 0.0
    %v889 = vadd.f32 %v887, %v888
    %890 = vadd.xlane.f32.xlu0 %v889
    %v891 = vpop.xlane.xlu0 %890
    %v892 = vadd.f32 %v698, %v699
    %v893 = vadd.f32 %v892, %v700
    %v894 = vadd.f32 %v893, %v701
    %v895 = vadd.f32 %v894, %v702
    %v896 = vadd.f32 %v895, %v703
    %v897 = vsel %vm202, %v704, 0.0
    %v898 = vadd.f32 %v896, %v897
    %899 = vadd.xlane.f32.xlu0 %v898
    %v900 = vpop.xlane.xlu0 %899
    %v901 = vadd.f32 %v705, %v706
    %v902 = vadd.f32 %v901, %v707
    %v903 = vadd.f32 %v902, %v708
    %v904 = vadd.f32 %v903, %v709
    %v905 = vadd.f32 %v904, %v710
    %v906 = vsel %vm202, %v711, 0.0
    %v907 = vadd.f32 %v905, %v906
    %908 = vadd.xlane.f32.xlu0 %v907
    %v909 = vpop.xlane.xlu0 %908
    %v910 = vadd.f32 %v712, %v713
    %v911 = vadd.f32 %v910, %v714
    %v912 = vadd.f32 %v911, %v715
    %v913 = vadd.f32 %v912, %v716
    %v914 = vadd.f32 %v913, %v717
    %v915 = vsel %vm202, %v718, 0.0
    %v916 = vadd.f32 %v914, %v915
    %917 = vadd.xlane.f32.xlu0 %v916
    %v918 = vpop.xlane.xlu0 %917
    %v919 = vadd.f32 %v719, %v720
    %v920 = vadd.f32 %v919, %v721
    %v921 = vadd.f32 %v920, %v722
    %v922 = vadd.f32 %v921, %v723
    %v923 = vadd.f32 %v922, %v724
    %v924 = vsel %vm202, %v725, 0.0
    %v925 = vadd.f32 %v923, %v924
    %926 = vadd.xlane.f32.xlu0 %v925
    %v927 = vpop.xlane.xlu0 %926
    %v928 = vadd.f32 %v726, %v727
    %v929 = vadd.f32 %v928, %v728
    %v930 = vadd.f32 %v929, %v729
    %v931 = vadd.f32 %v930, %v730
    %v932 = vadd.f32 %v931, %v731
    %v933 = vsel %vm202, %v732, 0.0
    %v934 = vadd.f32 %v932, %v933
    %935 = vadd.xlane.f32.xlu0 %v934
    %v936 = vpop.xlane.xlu0 %935
    %v937 = vadd.f32 %v733, %v734
    %v938 = vadd.f32 %v937, %v735
    %v939 = vadd.f32 %v938, %v736
    %v940 = vadd.f32 %v939, %v737
    %v941 = vadd.f32 %v940, %v738
    %v942 = vsel %vm202, %v739, 0.0
    %v943 = vadd.f32 %v941, %v942
    %944 = vadd.xlane.f32.xlu0 %v943
    %v945 = vpop.xlane.xlu0 %944
    %v946 = vadd.f32 %v740, %v741
    %v947 = vadd.f32 %v946, %v742
    %v948 = vadd.f32 %v947, %v743
    %v949 = vadd.f32 %v948, %v744
    %v950 = vadd.f32 %v949, %v745
    %v951 = vsel %vm202, %v746, 0.0
    %v952 = vadd.f32 %v950, %v951
    %953 = vadd.xlane.f32.xlu0 %v952
    %v954 = vpop.xlane.xlu0 %953
    %v955 = vadd.f32 %v747, %v748
    %v956 = vadd.f32 %v955, %v749
    %v957 = vadd.f32 %v956, %v750
    %v958 = vadd.f32 %v957, %v751
    %v959 = vadd.f32 %v958, %v752
    %v960 = vsel %vm202, %v753, 0.0
    %v961 = vadd.f32 %v959, %v960
    %962 = vadd.xlane.f32.xlu0 %v961
    %v963 = vpop.xlane.xlu0 %962
    %v964 = vadd.f32 %v754, %v755
    %v965 = vadd.f32 %v964, %v756
    %v966 = vadd.f32 %v965, %v757
    %v967 = vadd.f32 %v966, %v758
    %v968 = vadd.f32 %v967, %v759
    %v969 = vsel %vm202, %v760, 0.0
    %v970 = vadd.f32 %v968, %v969
    %971 = vadd.xlane.f32.xlu0 %v970
    %v972 = vpop.xlane.xlu0 %971
    %v973 = vadd.f32 %v761, %v762
    %v974 = vadd.f32 %v973, %v763
    %v975 = vadd.f32 %v974, %v764
    %v976 = vadd.f32 %v975, %v765
    %v977 = vadd.f32 %v976, %v766
    %v978 = vsel %vm202, %v767, 0.0
    %v979 = vadd.f32 %v977, %v978
    %980 = vadd.xlane.f32.xlu0 %v979
    %v981 = vpop.xlane.xlu0 %980
    %v982 = vadd.f32 %v768, %v769
    %v983 = vadd.f32 %v982, %v770
    %v984 = vadd.f32 %v983, %v771
    %v985 = vadd.f32 %v984, %v772
    %v986 = vadd.f32 %v985, %v773
    %v987 = vsel %vm202, %v774, 0.0
    %v988 = vadd.f32 %v986, %v987
    %989 = vadd.xlane.f32.xlu0 %v988
    %v990 = vpop.xlane.xlu0 %989
    %v991 = vmul.f32 %v783, %v414
    %v992 = vmul.f32 %v792, %v414
    %v993 = vmul.f32 %v801, %v414
    %v994 = vmul.f32 %v810, %v414
    %v995 = vmul.f32 %v819, %v414
    %v996 = vmul.f32 %v828, %v414
    %v997 = vmul.f32 %v837, %v414
    %v998 = vmul.f32 %v846, %v414
    %v999 = vmul.f32 %v855, %v414
    %v1000 = vmul.f32 %v864, %v414
    %v1001 = vmul.f32 %v873, %v414
    %v1002 = vmul.f32 %v882, %v414
    %v1003 = vmul.f32 %v891, %v414
    %v1004 = vmul.f32 %v900, %v414
    %v1005 = vmul.f32 %v909, %v414
    %v1006 = vmul.f32 %v918, %v414
    %v1007 = vmul.f32 %v927, %v414
    %v1008 = vmul.f32 %v936, %v414
    %v1009 = vmul.f32 %v945, %v414
    %v1010 = vmul.f32 %v954, %v414
    %v1011 = vmul.f32 %v963, %v414
    %v1012 = vmul.f32 %v972, %v414
    %v1013 = vmul.f32 %v981, %v414
    %v1014 = vmul.f32 %v990, %v414
    %v1015 = vadd.f32 %v991, 1e-05
    %v1016 = vadd.f32 %v992, 1e-05
    %v1017 = vadd.f32 %v993, 1e-05
    %v1018 = vadd.f32 %v994, 1e-05
    %v1019 = vadd.f32 %v995, 1e-05
    %v1020 = vadd.f32 %v996, 1e-05
    %v1021 = vadd.f32 %v997, 1e-05
    %v1022 = vadd.f32 %v998, 1e-05
    %v1023 = vadd.f32 %v999, 1e-05
    %v1024 = vadd.f32 %v1000, 1e-05
    %v1025 = vadd.f32 %v1001, 1e-05
    %v1026 = vadd.f32 %v1002, 1e-05
    %v1027 = vadd.f32 %v1003, 1e-05
    %v1028 = vadd.f32 %v1004, 1e-05
    %v1029 = vadd.f32 %v1005, 1e-05
    %v1030 = vadd.f32 %v1006, 1e-05
    %v1031 = vadd.f32 %v1007, 1e-05
    %v1032 = vadd.f32 %v1008, 1e-05
    %v1033 = vadd.f32 %v1009, 1e-05
    %v1034 = vadd.f32 %v1010, 1e-05
    %v1035 = vadd.f32 %v1011, 1e-05
    %v1036 = vadd.f32 %v1012, 1e-05
    %v1037 = vadd.f32 %v1013, 1e-05
    %v1038 = vadd.f32 %v1014, 1e-05
    %v1039 = vrsqrt.pop %v1015
    %v1040 = vrsqrt.pop %v1016
    %v1041 = vrsqrt.pop %v1017
    %v1042 = vrsqrt.pop %v1018
    %v1043 = vrsqrt.pop %v1019
    %v1044 = vrsqrt.pop %v1020
    %v1045 = vrsqrt.pop %v1021
    %v1046 = vrsqrt.pop %v1022
    %v1047 = vrsqrt.pop %v1023
    %v1048 = vrsqrt.pop %v1024
    %v1049 = vrsqrt.pop %v1025
    %v1050 = vrsqrt.pop %v1026
    %v1051 = vrsqrt.pop %v1027
    %v1052 = vrsqrt.pop %v1028
    %v1053 = vrsqrt.pop %v1029
    %v1054 = vrsqrt.pop %v1030
    %v1055 = vrsqrt.pop %v1031
    %v1056 = vrsqrt.pop %v1032
    %v1057 = vrsqrt.pop %v1033
    %v1058 = vrsqrt.pop %v1034
    %v1059 = vrsqrt.pop %v1035
    %v1060 = vrsqrt.pop %v1036
    %v1061 = vrsqrt.pop %v1037
    %v1062 = vrsqrt.pop %v1038
    %v1063 = vld [vmem:[%s1] sm:$0xff]
    %v1064 = vld [vmem:[%s1 + $0x8] sm:$0xff]
    %v1065 = vld [vmem:[%s1 + $0x10] sm:$0xff]
    %v1066 = vld [vmem:[%s1 + $0x18] sm:$0xff]
    %v1067 = vld [vmem:[%s1 + $0x20] sm:$0xff]
    %v1068 = vld [vmem:[%s1 + $0x28] sm:$0xff]
    %v1069 = vld [vmem:[%s1 + $0x30] sm:$0xff]
    %v1070 = vld [vmem:[%s1 + $0x38] sm:$0xff]
    %v1071 = vld [vmem:[%s1 + $0x40] sm:$0xff]
    %v1072 = vld [vmem:[%s1 + $0x48] sm:$0xff]
    %v1073 = vld [vmem:[%s1 + $0x50] sm:$0xff]
    %v1074 = vld [vmem:[%s1 + $0x58] sm:$0xff]
    %v1075 = vld [vmem:[%s1 + $0x60] sm:$0xff]
    %v1076 = vld [vmem:[%s1 + $0x68] sm:$0xff]
    %v1077 = vld [vmem:[%s1 + $0x70] sm:$0xff]
    %v1078 = vld [vmem:[%s1 + $0x78] sm:$0xff]
    %v1079 = vld [vmem:[%s1 + $0x80] sm:$0xff]
    %v1080 = vld [vmem:[%s1 + $0x88] sm:$0xff]
    %v1081 = vld [vmem:[%s1 + $0x90] sm:$0xff]
    %v1082 = vld [vmem:[%s1 + $0x98] sm:$0xff]
    %v1083 = vld [vmem:[%s1 + $0xa0] sm:$0xff]
    %v1084 = vld [vmem:[%s1 + $0xa8] sm:$0xff]
    %v1085 = vld [vmem:[%s1 + $0xb0] sm:$0xff]
    %v1086 = vld [vmem:[%s1 + $0xb8] sm:$0xff]
    %v1087 = vmul.f32 %v1039, %v1063
    %v1088 = vmul.f32 %v1040, %v1064
    %v1089 = vmul.f32 %v1041, %v1065
    %v1090 = vmul.f32 %v1042, %v1066
    %v1091 = vmul.f32 %v1043, %v1067
    %v1092 = vmul.f32 %v1044, %v1068
    %v1093 = vmul.f32 %v1045, %v1069
    %v1094 = vmul.f32 %v1046, %v1070
    %v1095 = vmul.f32 %v1047, %v1071
    %v1096 = vmul.f32 %v1048, %v1072
    %v1097 = vmul.f32 %v1049, %v1073
    %v1098 = vmul.f32 %v1050, %v1074
    %v1099 = vmul.f32 %v1051, %v1075
    %v1100 = vmul.f32 %v1052, %v1076
    %v1101 = vmul.f32 %v1053, %v1077
    %v1102 = vmul.f32 %v1054, %v1078
    %v1103 = vmul.f32 %v1055, %v1079
    %v1104 = vmul.f32 %v1056, %v1080
    %v1105 = vmul.f32 %v1057, %v1081
    %v1106 = vmul.f32 %v1058, %v1082
    %v1107 = vmul.f32 %v1059, %v1083
    %v1108 = vmul.f32 %v1060, %v1084
    %v1109 = vmul.f32 %v1061, %v1085
    %v1110 = vmul.f32 %v1062, %v1086
    %v1111 = vld [vmem:[%s2] sm:$0xff]
    %v1112 = vld [vmem:[%s2 + $0x8] sm:$0xff]
    %v1113 = vld [vmem:[%s2 + $0x10] sm:$0xff]
    %v1114 = vld [vmem:[%s2 + $0x18] sm:$0xff]
    %v1115 = vld [vmem:[%s2 + $0x20] sm:$0xff]
    %v1116 = vld [vmem:[%s2 + $0x28] sm:$0xff]
    %v1117 = vld [vmem:[%s2 + $0x30] sm:$0xff]
    %v1118 = vld [vmem:[%s2 + $0x38] sm:$0xff]
    %v1119 = vld [vmem:[%s2 + $0x40] sm:$0xff]
    %v1120 = vld [vmem:[%s2 + $0x48] sm:$0xff]
    %v1121 = vld [vmem:[%s2 + $0x50] sm:$0xff]
    %v1122 = vld [vmem:[%s2 + $0x58] sm:$0xff]
    %v1123 = vld [vmem:[%s2 + $0x60] sm:$0xff]
    %v1124 = vld [vmem:[%s2 + $0x68] sm:$0xff]
    %v1125 = vld [vmem:[%s2 + $0x70] sm:$0xff]
    %v1126 = vld [vmem:[%s2 + $0x78] sm:$0xff]
    %v1127 = vld [vmem:[%s2 + $0x80] sm:$0xff]
    %v1128 = vld [vmem:[%s2 + $0x88] sm:$0xff]
    %v1129 = vld [vmem:[%s2 + $0x90] sm:$0xff]
    %v1130 = vld [vmem:[%s2 + $0x98] sm:$0xff]
    %v1131 = vld [vmem:[%s2 + $0xa0] sm:$0xff]
    %v1132 = vld [vmem:[%s2 + $0xa8] sm:$0xff]
    %v1133 = vld [vmem:[%s2 + $0xb0] sm:$0xff]
    %v1134 = vld [vmem:[%s2 + $0xb8] sm:$0xff]
    %v1135 = vmul.f32 %v415, %v1087
    %v1136 = vmul.f32 %v416, %v1088
    %v1137 = vmul.f32 %v417, %v1089
    %v1138 = vmul.f32 %v418, %v1090
    %v1139 = vmul.f32 %v419, %v1091
    %v1140 = vmul.f32 %v420, %v1092
    %v1141 = vmul.f32 %v421, %v1093
    %v1142 = vmul.f32 %v422, %v1094
    %v1143 = vmul.f32 %v423, %v1095
    %v1144 = vmul.f32 %v424, %v1096
    %v1145 = vmul.f32 %v425, %v1097
    %v1146 = vmul.f32 %v426, %v1098
    %v1147 = vmul.f32 %v427, %v1099
    %v1148 = vmul.f32 %v428, %v1100
    %v1149 = vmul.f32 %v429, %v1101
    %v1150 = vmul.f32 %v430, %v1102
    %v1151 = vmul.f32 %v431, %v1103
    %v1152 = vmul.f32 %v432, %v1104
    %v1153 = vmul.f32 %v433, %v1105
    %v1154 = vmul.f32 %v434, %v1106
    %v1155 = vmul.f32 %v435, %v1107
    %v1156 = vmul.f32 %v436, %v1108
    %v1157 = vmul.f32 %v437, %v1109
    %v1158 = vmul.f32 %v438, %v1110
    %v1159 = vsub.f32 %v1111, %v1135
    %v1160 = vsub.f32 %v1112, %v1136
    %v1161 = vsub.f32 %v1113, %v1137
    %v1162 = vsub.f32 %v1114, %v1138
    %v1163 = vsub.f32 %v1115, %v1139
    %v1164 = vsub.f32 %v1116, %v1140
    %v1165 = vsub.f32 %v1117, %v1141
    %v1166 = vsub.f32 %v1118, %v1142
    %v1167 = vsub.f32 %v1119, %v1143
    %v1168 = vsub.f32 %v1120, %v1144
    %v1169 = vsub.f32 %v1121, %v1145
    %v1170 = vsub.f32 %v1122, %v1146
    %v1171 = vsub.f32 %v1123, %v1147
    %v1172 = vsub.f32 %v1124, %v1148
    %v1173 = vsub.f32 %v1125, %v1149
    %v1174 = vsub.f32 %v1126, %v1150
    %v1175 = vsub.f32 %v1127, %v1151
    %v1176 = vsub.f32 %v1128, %v1152
    %v1177 = vsub.f32 %v1129, %v1153
    %v1178 = vsub.f32 %v1130, %v1154
    %v1179 = vsub.f32 %v1131, %v1155
    %v1180 = vsub.f32 %v1132, %v1156
    %v1181 = vsub.f32 %v1133, %v1157
    %v1182 = vsub.f32 %v1134, %v1158
    %1184 = vset.pattern.permute.xlu0 0
    %1185 = vperm.xlu0 %1184, %v1087
    %v1186 = vpop.permute.xlu0 %1185
    %1189 = vset.pattern.permute.xlu0 0
    %1190 = vperm.xlu0 %1189, %v1088
    %v1191 = vpop.permute.xlu0 %1190
    %1194 = vset.pattern.permute.xlu0 0
    %1195 = vperm.xlu0 %1194, %v1089
    %v1196 = vpop.permute.xlu0 %1195
    %1199 = vset.pattern.permute.xlu0 0
    %1200 = vperm.xlu0 %1199, %v1090
    %v1201 = vpop.permute.xlu0 %1200
    %1204 = vset.pattern.permute.xlu0 0
    %1205 = vperm.xlu0 %1204, %v1091
    %v1206 = vpop.permute.xlu0 %1205
    %1209 = vset.pattern.permute.xlu0 0
    %1210 = vperm.xlu0 %1209, %v1092
    %v1211 = vpop.permute.xlu0 %1210
    %1214 = vset.pattern.permute.xlu0 0
    %1215 = vperm.xlu0 %1214, %v1093
    %v1216 = vpop.permute.xlu0 %1215
    %1219 = vset.pattern.permute.xlu0 0
    %1220 = vperm.xlu0 %1219, %v1094
    %v1221 = vpop.permute.xlu0 %1220
    %1224 = vset.pattern.permute.xlu0 0
    %1225 = vperm.xlu0 %1224, %v1095
    %v1226 = vpop.permute.xlu0 %1225
    %1229 = vset.pattern.permute.xlu0 0
    %1230 = vperm.xlu0 %1229, %v1096
    %v1231 = vpop.permute.xlu0 %1230
    %1234 = vset.pattern.permute.xlu0 0
    %1235 = vperm.xlu0 %1234, %v1097
    %v1236 = vpop.permute.xlu0 %1235
    %1239 = vset.pattern.permute.xlu0 0
    %1240 = vperm.xlu0 %1239, %v1098
    %v1241 = vpop.permute.xlu0 %1240
    %1244 = vset.pattern.permute.xlu0 0
    %1245 = vperm.xlu0 %1244, %v1099
    %v1246 = vpop.permute.xlu0 %1245
    %1249 = vset.pattern.permute.xlu0 0
    %1250 = vperm.xlu0 %1249, %v1100
    %v1251 = vpop.permute.xlu0 %1250
    %1254 = vset.pattern.permute.xlu0 0
    %1255 = vperm.xlu0 %1254, %v1101
    %v1256 = vpop.permute.xlu0 %1255
    %1259 = vset.pattern.permute.xlu0 0
    %1260 = vperm.xlu0 %1259, %v1102
    %v1261 = vpop.permute.xlu0 %1260
    %1264 = vset.pattern.permute.xlu0 0
    %1265 = vperm.xlu0 %1264, %v1103
    %v1266 = vpop.permute.xlu0 %1265
    %1269 = vset.pattern.permute.xlu0 0
    %1270 = vperm.xlu0 %1269, %v1104
    %v1271 = vpop.permute.xlu0 %1270
    %1274 = vset.pattern.permute.xlu0 0
    %1275 = vperm.xlu0 %1274, %v1105
    %v1276 = vpop.permute.xlu0 %1275
    %1279 = vset.pattern.permute.xlu0 0
    %1280 = vperm.xlu0 %1279, %v1106
    %v1281 = vpop.permute.xlu0 %1280
    %1284 = vset.pattern.permute.xlu0 0
    %1285 = vperm.xlu0 %1284, %v1107
    %v1286 = vpop.permute.xlu0 %1285
    %1289 = vset.pattern.permute.xlu0 0
    %1290 = vperm.xlu0 %1289, %v1108
    %v1291 = vpop.permute.xlu0 %1290
    %1294 = vset.pattern.permute.xlu0 0
    %1295 = vperm.xlu0 %1294, %v1109
    %v1296 = vpop.permute.xlu0 %1295
    %1299 = vset.pattern.permute.xlu0 0
    %1300 = vperm.xlu0 %1299, %v1110
    %v1301 = vpop.permute.xlu0 %1300
    %v1303 = vmul.f32 %v29, %v1186
    %v1304 = vmul.f32 %v30, %v1186
    %v1305 = vmul.f32 %v31, %v1186
    %v1306 = vmul.f32 %v32, %v1186
    %v1307 = vmul.f32 %v33, %v1186
    %v1308 = vmul.f32 %v34, %v1186
    %v1309 = vmul.f32 %v35, %v1186
    %v1310 = vmul.f32 %v36, %v1191
    %v1311 = vmul.f32 %v37, %v1191
    %v1312 = vmul.f32 %v38, %v1191
    %v1313 = vmul.f32 %v39, %v1191
    %v1314 = vmul.f32 %v40, %v1191
    %v1315 = vmul.f32 %v41, %v1191
    %v1316 = vmul.f32 %v42, %v1191
    %v1317 = vmul.f32 %v43, %v1196
    %v1318 = vmul.f32 %v44, %v1196
    %v1319 = vmul.f32 %v45, %v1196
    %v1320 = vmul.f32 %v46, %v1196
    %v1321 = vmul.f32 %v47, %v1196
    %v1322 = vmul.f32 %v48, %v1196
    %v1323 = vmul.f32 %v49, %v1196
    %v1324 = vmul.f32 %v50, %v1201
    %v1325 = vmul.f32 %v51, %v1201
    %v1326 = vmul.f32 %v52, %v1201
    %v1327 = vmul.f32 %v53, %v1201
    %v1328 = vmul.f32 %v54, %v1201
    %v1329 = vmul.f32 %v55, %v1201
    %v1330 = vmul.f32 %v56, %v1201
    %v1331 = vmul.f32 %v57, %v1206
    %v1332 = vmul.f32 %v58, %v1206
    %v1333 = vmul.f32 %v59, %v1206
    %v1334 = vmul.f32 %v60, %v1206
    %v1335 = vmul.f32 %v61, %v1206
    %v1336 = vmul.f32 %v62, %v1206
    %v1337 = vmul.f32 %v63, %v1206
    %v1338 = vmul.f32 %v64, %v1211
    %v1339 = vmul.f32 %v65, %v1211
    %v1340 = vmul.f32 %v66, %v1211
    %v1341 = vmul.f32 %v67, %v1211
    %v1342 = vmul.f32 %v68, %v1211
    %v1343 = vmul.f32 %v69, %v1211
    %v1344 = vmul.f32 %v70, %v1211
    %v1345 = vmul.f32 %v71, %v1216
    %v1346 = vmul.f32 %v72, %v1216
    %v1347 = vmul.f32 %v73, %v1216
    %v1348 = vmul.f32 %v74, %v1216
    %v1349 = vmul.f32 %v75, %v1216
    %v1350 = vmul.f32 %v76, %v1216
    %v1351 = vmul.f32 %v77, %v1216
    %v1352 = vmul.f32 %v78, %v1221
    %v1353 = vmul.f32 %v79, %v1221
    %v1354 = vmul.f32 %v80, %v1221
    %v1355 = vmul.f32 %v81, %v1221
    %v1356 = vmul.f32 %v82, %v1221
    %v1357 = vmul.f32 %v83, %v1221
    %v1358 = vmul.f32 %v84, %v1221
    %v1359 = vmul.f32 %v85, %v1226
    %v1360 = vmul.f32 %v86, %v1226
    %v1361 = vmul.f32 %v87, %v1226
    %v1362 = vmul.f32 %v88, %v1226
    %v1363 = vmul.f32 %v89, %v1226
    %v1364 = vmul.f32 %v90, %v1226
    %v1365 = vmul.f32 %v91, %v1226
    %v1366 = vmul.f32 %v92, %v1231
    %v1367 = vmul.f32 %v93, %v1231
    %v1368 = vmul.f32 %v94, %v1231
    %v1369 = vmul.f32 %v95, %v1231
    %v1370 = vmul.f32 %v96, %v1231
    %v1371 = vmul.f32 %v97, %v1231
    %v1372 = vmul.f32 %v98, %v1231
    %v1373 = vmul.f32 %v99, %v1236
    %v1374 = vmul.f32 %v100, %v1236
    %v1375 = vmul.f32 %v101, %v1236
    %v1376 = vmul.f32 %v102, %v1236
    %v1377 = vmul.f32 %v103, %v1236
    %v1378 = vmul.f32 %v104, %v1236
    %v1379 = vmul.f32 %v105, %v1236
    %v1380 = vmul.f32 %v106, %v1241
    %v1381 = vmul.f32 %v107, %v1241
    %v1382 = vmul.f32 %v108, %v1241
    %v1383 = vmul.f32 %v109, %v1241
    %v1384 = vmul.f32 %v110, %v1241
    %v1385 = vmul.f32 %v111, %v1241
    %v1386 = vmul.f32 %v112, %v1241
    %v1387 = vmul.f32 %v113, %v1246
    %v1388 = vmul.f32 %v114, %v1246
    %v1389 = vmul.f32 %v115, %v1246
    %v1390 = vmul.f32 %v116, %v1246
    %v1391 = vmul.f32 %v117, %v1246
    %v1392 = vmul.f32 %v118, %v1246
    %v1393 = vmul.f32 %v119, %v1246
    %v1394 = vmul.f32 %v120, %v1251
    %v1395 = vmul.f32 %v121, %v1251
    %v1396 = vmul.f32 %v122, %v1251
    %v1397 = vmul.f32 %v123, %v1251
    %v1398 = vmul.f32 %v124, %v1251
    %v1399 = vmul.f32 %v125, %v1251
    %v1400 = vmul.f32 %v126, %v1251
    %v1401 = vmul.f32 %v127, %v1256
    %v1402 = vmul.f32 %v128, %v1256
    %v1403 = vmul.f32 %v129, %v1256
    %v1404 = vmul.f32 %v130, %v1256
    %v1405 = vmul.f32 %v131, %v1256
    %v1406 = vmul.f32 %v132, %v1256
    %v1407 = vmul.f32 %v133, %v1256
    %v1408 = vmul.f32 %v134, %v1261
    %v1409 = vmul.f32 %v135, %v1261
    %v1410 = vmul.f32 %v136, %v1261
    %v1411 = vmul.f32 %v137, %v1261
    %v1412 = vmul.f32 %v138, %v1261
    %v1413 = vmul.f32 %v139, %v1261
    %v1414 = vmul.f32 %v140, %v1261
    %v1415 = vmul.f32 %v141, %v1266
    %v1416 = vmul.f32 %v142, %v1266
    %v1417 = vmul.f32 %v143, %v1266
    %v1418 = vmul.f32 %v144, %v1266
    %v1419 = vmul.f32 %v145, %v1266
    %v1420 = vmul.f32 %v146, %v1266
    %v1421 = vmul.f32 %v147, %v1266
    %v1422 = vmul.f32 %v148, %v1271
    %v1423 = vmul.f32 %v149, %v1271
    %v1424 = vmul.f32 %v150, %v1271
    %v1425 = vmul.f32 %v151, %v1271
    %v1426 = vmul.f32 %v152, %v1271
    %v1427 = vmul.f32 %v153, %v1271
    %v1428 = vmul.f32 %v154, %v1271
    %v1429 = vmul.f32 %v155, %v1276
    %v1430 = vmul.f32 %v156, %v1276
    %v1431 = vmul.f32 %v157, %v1276
    %v1432 = vmul.f32 %v158, %v1276
    %v1433 = vmul.f32 %v159, %v1276
    %v1434 = vmul.f32 %v160, %v1276
    %v1435 = vmul.f32 %v161, %v1276
    %v1436 = vmul.f32 %v162, %v1281
    %v1437 = vmul.f32 %v163, %v1281
    %v1438 = vmul.f32 %v164, %v1281
    %v1439 = vmul.f32 %v165, %v1281
    %v1440 = vmul.f32 %v166, %v1281
    %v1441 = vmul.f32 %v167, %v1281
    %v1442 = vmul.f32 %v168, %v1281
    %v1443 = vmul.f32 %v169, %v1286
    %v1444 = vmul.f32 %v170, %v1286
    %v1445 = vmul.f32 %v171, %v1286
    %v1446 = vmul.f32 %v172, %v1286
    %v1447 = vmul.f32 %v173, %v1286
    %v1448 = vmul.f32 %v174, %v1286
    %v1449 = vmul.f32 %v175, %v1286
    %v1450 = vmul.f32 %v176, %v1291
    %v1451 = vmul.f32 %v177, %v1291
    %v1452 = vmul.f32 %v178, %v1291
    %v1453 = vmul.f32 %v179, %v1291
    %v1454 = vmul.f32 %v180, %v1291
    %v1455 = vmul.f32 %v181, %v1291
    %v1456 = vmul.f32 %v182, %v1291
    %v1457 = vmul.f32 %v183, %v1296
    %v1458 = vmul.f32 %v184, %v1296
    %v1459 = vmul.f32 %v185, %v1296
    %v1460 = vmul.f32 %v186, %v1296
    %v1461 = vmul.f32 %v187, %v1296
    %v1462 = vmul.f32 %v188, %v1296
    %v1463 = vmul.f32 %v189, %v1296
    %v1464 = vmul.f32 %v190, %v1301
    %v1465 = vmul.f32 %v191, %v1301
    %v1466 = vmul.f32 %v192, %v1301
    %v1467 = vmul.f32 %v193, %v1301
    %v1468 = vmul.f32 %v194, %v1301
    %v1469 = vmul.f32 %v195, %v1301
    %v1470 = vmul.f32 %v196, %v1301
    %1472 = vset.pattern.permute.xlu0 0
    %1473 = vperm.xlu0 %1472, %v1159
    %v1474 = vpop.permute.xlu0 %1473
    %1477 = vset.pattern.permute.xlu0 0
    %1478 = vperm.xlu0 %1477, %v1160
    %v1479 = vpop.permute.xlu0 %1478
    %1482 = vset.pattern.permute.xlu0 0
    %1483 = vperm.xlu0 %1482, %v1161
    %v1484 = vpop.permute.xlu0 %1483
    %1487 = vset.pattern.permute.xlu0 0
    %1488 = vperm.xlu0 %1487, %v1162
    %v1489 = vpop.permute.xlu0 %1488
    %1492 = vset.pattern.permute.xlu0 0
    %1493 = vperm.xlu0 %1492, %v1163
    %v1494 = vpop.permute.xlu0 %1493
    %1497 = vset.pattern.permute.xlu0 0
    %1498 = vperm.xlu0 %1497, %v1164
    %v1499 = vpop.permute.xlu0 %1498
    %1502 = vset.pattern.permute.xlu0 0
    %1503 = vperm.xlu0 %1502, %v1165
    %v1504 = vpop.permute.xlu0 %1503
    %1507 = vset.pattern.permute.xlu0 0
    %1508 = vperm.xlu0 %1507, %v1166
    %v1509 = vpop.permute.xlu0 %1508
    %1512 = vset.pattern.permute.xlu0 0
    %1513 = vperm.xlu0 %1512, %v1167
    %v1514 = vpop.permute.xlu0 %1513
    %1517 = vset.pattern.permute.xlu0 0
    %1518 = vperm.xlu0 %1517, %v1168
    %v1519 = vpop.permute.xlu0 %1518
    %1522 = vset.pattern.permute.xlu0 0
    %1523 = vperm.xlu0 %1522, %v1169
    %v1524 = vpop.permute.xlu0 %1523
    %1527 = vset.pattern.permute.xlu0 0
    %1528 = vperm.xlu0 %1527, %v1170
    %v1529 = vpop.permute.xlu0 %1528
    %1532 = vset.pattern.permute.xlu0 0
    %1533 = vperm.xlu0 %1532, %v1171
    %v1534 = vpop.permute.xlu0 %1533
    %1537 = vset.pattern.permute.xlu0 0
    %1538 = vperm.xlu0 %1537, %v1172
    %v1539 = vpop.permute.xlu0 %1538
    %1542 = vset.pattern.permute.xlu0 0
    %1543 = vperm.xlu0 %1542, %v1173
    %v1544 = vpop.permute.xlu0 %1543
    %1547 = vset.pattern.permute.xlu0 0
    %1548 = vperm.xlu0 %1547, %v1174
    %v1549 = vpop.permute.xlu0 %1548
    %1552 = vset.pattern.permute.xlu0 0
    %1553 = vperm.xlu0 %1552, %v1175
    %v1554 = vpop.permute.xlu0 %1553
    %1557 = vset.pattern.permute.xlu0 0
    %1558 = vperm.xlu0 %1557, %v1176
    %v1559 = vpop.permute.xlu0 %1558
    %1562 = vset.pattern.permute.xlu0 0
    %1563 = vperm.xlu0 %1562, %v1177
    %v1564 = vpop.permute.xlu0 %1563
    %1567 = vset.pattern.permute.xlu0 0
    %1568 = vperm.xlu0 %1567, %v1178
    %v1569 = vpop.permute.xlu0 %1568
    %1572 = vset.pattern.permute.xlu0 0
    %1573 = vperm.xlu0 %1572, %v1179
    %v1574 = vpop.permute.xlu0 %1573
    %1577 = vset.pattern.permute.xlu0 0
    %1578 = vperm.xlu0 %1577, %v1180
    %v1579 = vpop.permute.xlu0 %1578
    %1582 = vset.pattern.permute.xlu0 0
    %1583 = vperm.xlu0 %1582, %v1181
    %v1584 = vpop.permute.xlu0 %1583
    %1587 = vset.pattern.permute.xlu0 0
    %1588 = vperm.xlu0 %1587, %v1182
    %v1589 = vpop.permute.xlu0 %1588
    %v1591 = vadd.f32 %v1303, %v1474
    %v1592 = vadd.f32 %v1304, %v1474
    %v1593 = vadd.f32 %v1305, %v1474
    %v1594 = vadd.f32 %v1306, %v1474
    %v1595 = vadd.f32 %v1307, %v1474
    %v1596 = vadd.f32 %v1308, %v1474
    %v1597 = vadd.f32 %v1309, %v1474
    %v1598 = vadd.f32 %v1310, %v1479
    %v1599 = vadd.f32 %v1311, %v1479
    %v1600 = vadd.f32 %v1312, %v1479
    %v1601 = vadd.f32 %v1313, %v1479
    %v1602 = vadd.f32 %v1314, %v1479
    %v1603 = vadd.f32 %v1315, %v1479
    %v1604 = vadd.f32 %v1316, %v1479
    %v1605 = vadd.f32 %v1317, %v1484
    %v1606 = vadd.f32 %v1318, %v1484
    %v1607 = vadd.f32 %v1319, %v1484
    %v1608 = vadd.f32 %v1320, %v1484
    %v1609 = vadd.f32 %v1321, %v1484
    %v1610 = vadd.f32 %v1322, %v1484
    %v1611 = vadd.f32 %v1323, %v1484
    %v1612 = vadd.f32 %v1324, %v1489
    %v1613 = vadd.f32 %v1325, %v1489
    %v1614 = vadd.f32 %v1326, %v1489
    %v1615 = vadd.f32 %v1327, %v1489
    %v1616 = vadd.f32 %v1328, %v1489
    %v1617 = vadd.f32 %v1329, %v1489
    %v1618 = vadd.f32 %v1330, %v1489
    %v1619 = vadd.f32 %v1331, %v1494
    %v1620 = vadd.f32 %v1332, %v1494
    %v1621 = vadd.f32 %v1333, %v1494
    %v1622 = vadd.f32 %v1334, %v1494
    %v1623 = vadd.f32 %v1335, %v1494
    %v1624 = vadd.f32 %v1336, %v1494
    %v1625 = vadd.f32 %v1337, %v1494
    %v1626 = vadd.f32 %v1338, %v1499
    %v1627 = vadd.f32 %v1339, %v1499
    %v1628 = vadd.f32 %v1340, %v1499
    %v1629 = vadd.f32 %v1341, %v1499
    %v1630 = vadd.f32 %v1342, %v1499
    %v1631 = vadd.f32 %v1343, %v1499
    %v1632 = vadd.f32 %v1344, %v1499
    %v1633 = vadd.f32 %v1345, %v1504
    %v1634 = vadd.f32 %v1346, %v1504
    %v1635 = vadd.f32 %v1347, %v1504
    %v1636 = vadd.f32 %v1348, %v1504
    %v1637 = vadd.f32 %v1349, %v1504
    %v1638 = vadd.f32 %v1350, %v1504
    %v1639 = vadd.f32 %v1351, %v1504
    %v1640 = vadd.f32 %v1352, %v1509
    %v1641 = vadd.f32 %v1353, %v1509
    %v1642 = vadd.f32 %v1354, %v1509
    %v1643 = vadd.f32 %v1355, %v1509
    %v1644 = vadd.f32 %v1356, %v1509
    %v1645 = vadd.f32 %v1357, %v1509
    %v1646 = vadd.f32 %v1358, %v1509
    %v1647 = vadd.f32 %v1359, %v1514
    %v1648 = vadd.f32 %v1360, %v1514
    %v1649 = vadd.f32 %v1361, %v1514
    %v1650 = vadd.f32 %v1362, %v1514
    %v1651 = vadd.f32 %v1363, %v1514
    %v1652 = vadd.f32 %v1364, %v1514
    %v1653 = vadd.f32 %v1365, %v1514
    %v1654 = vadd.f32 %v1366, %v1519
    %v1655 = vadd.f32 %v1367, %v1519
    %v1656 = vadd.f32 %v1368, %v1519
    %v1657 = vadd.f32 %v1369, %v1519
    %v1658 = vadd.f32 %v1370, %v1519
    %v1659 = vadd.f32 %v1371, %v1519
    %v1660 = vadd.f32 %v1372, %v1519
    %v1661 = vadd.f32 %v1373, %v1524
    %v1662 = vadd.f32 %v1374, %v1524
    %v1663 = vadd.f32 %v1375, %v1524
    %v1664 = vadd.f32 %v1376, %v1524
    %v1665 = vadd.f32 %v1377, %v1524
    %v1666 = vadd.f32 %v1378, %v1524
    %v1667 = vadd.f32 %v1379, %v1524
    %v1668 = vadd.f32 %v1380, %v1529
    %v1669 = vadd.f32 %v1381, %v1529
    %v1670 = vadd.f32 %v1382, %v1529
    %v1671 = vadd.f32 %v1383, %v1529
    %v1672 = vadd.f32 %v1384, %v1529
    %v1673 = vadd.f32 %v1385, %v1529
    %v1674 = vadd.f32 %v1386, %v1529
    %v1675 = vadd.f32 %v1387, %v1534
    %v1676 = vadd.f32 %v1388, %v1534
    %v1677 = vadd.f32 %v1389, %v1534
    %v1678 = vadd.f32 %v1390, %v1534
    %v1679 = vadd.f32 %v1391, %v1534
    %v1680 = vadd.f32 %v1392, %v1534
    %v1681 = vadd.f32 %v1393, %v1534
    %v1682 = vadd.f32 %v1394, %v1539
    %v1683 = vadd.f32 %v1395, %v1539
    %v1684 = vadd.f32 %v1396, %v1539
    %v1685 = vadd.f32 %v1397, %v1539
    %v1686 = vadd.f32 %v1398, %v1539
    %v1687 = vadd.f32 %v1399, %v1539
    %v1688 = vadd.f32 %v1400, %v1539
    %v1689 = vadd.f32 %v1401, %v1544
    %v1690 = vadd.f32 %v1402, %v1544
    %v1691 = vadd.f32 %v1403, %v1544
    %v1692 = vadd.f32 %v1404, %v1544
    %v1693 = vadd.f32 %v1405, %v1544
    %v1694 = vadd.f32 %v1406, %v1544
    %v1695 = vadd.f32 %v1407, %v1544
    %v1696 = vadd.f32 %v1408, %v1549
    %v1697 = vadd.f32 %v1409, %v1549
    %v1698 = vadd.f32 %v1410, %v1549
    %v1699 = vadd.f32 %v1411, %v1549
    %v1700 = vadd.f32 %v1412, %v1549
    %v1701 = vadd.f32 %v1413, %v1549
    %v1702 = vadd.f32 %v1414, %v1549
    %v1703 = vadd.f32 %v1415, %v1554
    %v1704 = vadd.f32 %v1416, %v1554
    %v1705 = vadd.f32 %v1417, %v1554
    %v1706 = vadd.f32 %v1418, %v1554
    %v1707 = vadd.f32 %v1419, %v1554
    %v1708 = vadd.f32 %v1420, %v1554
    %v1709 = vadd.f32 %v1421, %v1554
    %v1710 = vadd.f32 %v1422, %v1559
    %v1711 = vadd.f32 %v1423, %v1559
    %v1712 = vadd.f32 %v1424, %v1559
    %v1713 = vadd.f32 %v1425, %v1559
    %v1714 = vadd.f32 %v1426, %v1559
    %v1715 = vadd.f32 %v1427, %v1559
    %v1716 = vadd.f32 %v1428, %v1559
    %v1717 = vadd.f32 %v1429, %v1564
    %v1718 = vadd.f32 %v1430, %v1564
    %v1719 = vadd.f32 %v1431, %v1564
    %v1720 = vadd.f32 %v1432, %v1564
    %v1721 = vadd.f32 %v1433, %v1564
    %v1722 = vadd.f32 %v1434, %v1564
    %v1723 = vadd.f32 %v1435, %v1564
    %v1724 = vadd.f32 %v1436, %v1569
    %v1725 = vadd.f32 %v1437, %v1569
    %v1726 = vadd.f32 %v1438, %v1569
    %v1727 = vadd.f32 %v1439, %v1569
    %v1728 = vadd.f32 %v1440, %v1569
    %v1729 = vadd.f32 %v1441, %v1569
    %v1730 = vadd.f32 %v1442, %v1569
    %v1731 = vadd.f32 %v1443, %v1574
    %v1732 = vadd.f32 %v1444, %v1574
    %v1733 = vadd.f32 %v1445, %v1574
    %v1734 = vadd.f32 %v1446, %v1574
    %v1735 = vadd.f32 %v1447, %v1574
    %v1736 = vadd.f32 %v1448, %v1574
    %v1737 = vadd.f32 %v1449, %v1574
    %v1738 = vadd.f32 %v1450, %v1579
    %v1739 = vadd.f32 %v1451, %v1579
    %v1740 = vadd.f32 %v1452, %v1579
    %v1741 = vadd.f32 %v1453, %v1579
    %v1742 = vadd.f32 %v1454, %v1579
    %v1743 = vadd.f32 %v1455, %v1579
    %v1744 = vadd.f32 %v1456, %v1579
    %v1745 = vadd.f32 %v1457, %v1584
    %v1746 = vadd.f32 %v1458, %v1584
    %v1747 = vadd.f32 %v1459, %v1584
    %v1748 = vadd.f32 %v1460, %v1584
    %v1749 = vadd.f32 %v1461, %v1584
    %v1750 = vadd.f32 %v1462, %v1584
    %v1751 = vadd.f32 %v1463, %v1584
    %v1752 = vadd.f32 %v1464, %v1589
    %v1753 = vadd.f32 %v1465, %v1589
    %v1754 = vadd.f32 %v1466, %v1589
    %v1755 = vadd.f32 %v1467, %v1589
    %v1756 = vadd.f32 %v1468, %v1589
    %v1757 = vadd.f32 %v1469, %v1589
    %v1758 = vadd.f32 %v1470, %v1589
    %1759 = vst [vmem:[#allocation5] sm:$0xff] %v1591
    %1760 = vst [vmem:[#allocation5 + $0x8] sm:$0xff] %v1592
    %1761 = vst [vmem:[#allocation5 + $0x10] sm:$0xff] %v1593
    %1762 = vst [vmem:[#allocation5 + $0x18] sm:$0xff] %v1594
    %1763 = vst [vmem:[#allocation5 + $0x20] sm:$0xff] %v1595
    %1764 = vst [vmem:[#allocation5 + $0x28] sm:$0xff] %v1596
    %1765 = vst.msk [vmem:[#allocation5 + $0x30] sm:$0xff] %vm202, %v1597
    %1766 = vst [vmem:[#allocation5 + $0x38] sm:$0xff] %v1598
    %1767 = vst [vmem:[#allocation5 + $0x40] sm:$0xff] %v1599
    %1768 = vst [vmem:[#allocation5 + $0x48] sm:$0xff] %v1600
    %1769 = vst [vmem:[#allocation5 + $0x50] sm:$0xff] %v1601
    %1770 = vst [vmem:[#allocation5 + $0x58] sm:$0xff] %v1602
    %1771 = vst [vmem:[#allocation5 + $0x60] sm:$0xff] %v1603
    %1772 = vst.msk [vmem:[#allocation5 + $0x68] sm:$0xff] %vm202, %v1604
    %1773 = vst [vmem:[#allocation5 + $0x70] sm:$0xff] %v1605
    %1774 = vst [vmem:[#allocation5 + $0x78] sm:$0xff] %v1606
    %1775 = vst [vmem:[#allocation5 + $0x80] sm:$0xff] %v1607
    %1776 = vst [vmem:[#allocation5 + $0x88] sm:$0xff] %v1608
    %1777 = vst [vmem:[#allocation5 + $0x90] sm:$0xff] %v1609
    %1778 = vst [vmem:[#allocation5 + $0x98] sm:$0xff] %v1610
    %1779 = vst.msk [vmem:[#allocation5 + $0xa0] sm:$0xff] %vm202, %v1611
    %1780 = vst [vmem:[#allocation5 + $0xa8] sm:$0xff] %v1612
    %1781 = vst [vmem:[#allocation5 + $0xb0] sm:$0xff] %v1613
    %1782 = vst [vmem:[#allocation5 + $0xb8] sm:$0xff] %v1614
    %1783 = vst [vmem:[#allocation5 + $0xc0] sm:$0xff] %v1615
    %1784 = vst [vmem:[#allocation5 + $0xc8] sm:$0xff] %v1616
    %1785 = vst [vmem:[#allocation5 + $0xd0] sm:$0xff] %v1617
    %1786 = vst.msk [vmem:[#allocation5 + $0xd8] sm:$0xff] %vm202, %v1618
    %1787 = vst [vmem:[#allocation5 + $0xe0] sm:$0xff] %v1619
    %1788 = vst [vmem:[#allocation5 + $0xe8] sm:$0xff] %v1620
    %1789 = vst [vmem:[#allocation5 + $0xf0] sm:$0xff] %v1621
    %1790 = vst [vmem:[#allocation5 + $0xf8] sm:$0xff] %v1622
    %1791 = vst [vmem:[#allocation5 + $0x100] sm:$0xff] %v1623
    %1792 = vst [vmem:[#allocation5 + $0x108] sm:$0xff] %v1624
    %1793 = vst.msk [vmem:[#allocation5 + $0x110] sm:$0xff] %vm202, %v1625
    %1794 = vst [vmem:[#allocation5 + $0x118] sm:$0xff] %v1626
    %1795 = vst [vmem:[#allocation5 + $0x120] sm:$0xff] %v1627
    %1796 = vst [vmem:[#allocation5 + $0x128] sm:$0xff] %v1628
    %1797 = vst [vmem:[#allocation5 + $0x130] sm:$0xff] %v1629
    %1798 = vst [vmem:[#allocation5 + $0x138] sm:$0xff] %v1630
    %1799 = vst [vmem:[#allocation5 + $0x140] sm:$0xff] %v1631
    %1800 = vst.msk [vmem:[#allocation5 + $0x148] sm:$0xff] %vm202, %v1632
    %1801 = vst [vmem:[#allocation5 + $0x150] sm:$0xff] %v1633
    %1802 = vst [vmem:[#allocation5 + $0x158] sm:$0xff] %v1634
    %1803 = vst [vmem:[#allocation5 + $0x160] sm:$0xff] %v1635
    %1804 = vst [vmem:[#allocation5 + $0x168] sm:$0xff] %v1636
    %1805 = vst [vmem:[#allocation5 + $0x170] sm:$0xff] %v1637
    %1806 = vst [vmem:[#allocation5 + $0x178] sm:$0xff] %v1638
    %1807 = vst.msk [vmem:[#allocation5 + $0x180] sm:$0xff] %vm202, %v1639
    %1808 = vst [vmem:[#allocation5 + $0x188] sm:$0xff] %v1640
    %1809 = vst [vmem:[#allocation5 + $0x190] sm:$0xff] %v1641
    %1810 = vst [vmem:[#allocation5 + $0x198] sm:$0xff] %v1642
    %1811 = vst [vmem:[#allocation5 + $0x1a0] sm:$0xff] %v1643
    %1812 = vst [vmem:[#allocation5 + $0x1a8] sm:$0xff] %v1644
    %1813 = vst [vmem:[#allocation5 + $0x1b0] sm:$0xff] %v1645
    %1814 = vst.msk [vmem:[#allocation5 + $0x1b8] sm:$0xff] %vm202, %v1646
    %1815 = vst [vmem:[#allocation5 + $0x1c0] sm:$0xff] %v1647
    %1816 = vst [vmem:[#allocation5 + $0x1c8] sm:$0xff] %v1648
    %1817 = vst [vmem:[#allocation5 + $0x1d0] sm:$0xff] %v1649
    %1818 = vst [vmem:[#allocation5 + $0x1d8] sm:$0xff] %v1650
    %1819 = vst [vmem:[#allocation5 + $0x1e0] sm:$0xff] %v1651
    %1820 = vst [vmem:[#allocation5 + $0x1e8] sm:$0xff] %v1652
    %1821 = vst.msk [vmem:[#allocation5 + $0x1f0] sm:$0xff] %vm202, %v1653
    %1822 = vst [vmem:[#allocation5 + $0x1f8] sm:$0xff] %v1654
    %1823 = vst [vmem:[#allocation5 + $0x200] sm:$0xff] %v1655
    %1824 = vst [vmem:[#allocation5 + $0x208] sm:$0xff] %v1656
    %1825 = vst [vmem:[#allocation5 + $0x210] sm:$0xff] %v1657
    %1826 = vst [vmem:[#allocation5 + $0x218] sm:$0xff] %v1658
    %1827 = vst [vmem:[#allocation5 + $0x220] sm:$0xff] %v1659
    %1828 = vst.msk [vmem:[#allocation5 + $0x228] sm:$0xff] %vm202, %v1660
    %1829 = vst [vmem:[#allocation5 + $0x230] sm:$0xff] %v1661
    %1830 = vst [vmem:[#allocation5 + $0x238] sm:$0xff] %v1662
    %1831 = vst [vmem:[#allocation5 + $0x240] sm:$0xff] %v1663
    %1832 = vst [vmem:[#allocation5 + $0x248] sm:$0xff] %v1664
    %1833 = vst [vmem:[#allocation5 + $0x250] sm:$0xff] %v1665
    %1834 = vst [vmem:[#allocation5 + $0x258] sm:$0xff] %v1666
    %1835 = vst.msk [vmem:[#allocation5 + $0x260] sm:$0xff] %vm202, %v1667
    %1836 = vst [vmem:[#allocation5 + $0x268] sm:$0xff] %v1668
    %1837 = vst [vmem:[#allocation5 + $0x270] sm:$0xff] %v1669
    %1838 = vst [vmem:[#allocation5 + $0x278] sm:$0xff] %v1670
    %1839 = vst [vmem:[#allocation5 + $0x280] sm:$0xff] %v1671
    %1840 = vst [vmem:[#allocation5 + $0x288] sm:$0xff] %v1672
    %1841 = vst [vmem:[#allocation5 + $0x290] sm:$0xff] %v1673
    %1842 = vst.msk [vmem:[#allocation5 + $0x298] sm:$0xff] %vm202, %v1674
    %1843 = vst [vmem:[#allocation5 + $0x2a0] sm:$0xff] %v1675
    %1844 = vst [vmem:[#allocation5 + $0x2a8] sm:$0xff] %v1676
    %1845 = vst [vmem:[#allocation5 + $0x2b0] sm:$0xff] %v1677
    %1846 = vst [vmem:[#allocation5 + $0x2b8] sm:$0xff] %v1678
    %1847 = vst [vmem:[#allocation5 + $0x2c0] sm:$0xff] %v1679
    %1848 = vst [vmem:[#allocation5 + $0x2c8] sm:$0xff] %v1680
    %1849 = vst.msk [vmem:[#allocation5 + $0x2d0] sm:$0xff] %vm202, %v1681
    %1850 = vst [vmem:[#allocation5 + $0x2d8] sm:$0xff] %v1682
    %1851 = vst [vmem:[#allocation5 + $0x2e0] sm:$0xff] %v1683
    %1852 = vst [vmem:[#allocation5 + $0x2e8] sm:$0xff] %v1684
    %1853 = vst [vmem:[#allocation5 + $0x2f0] sm:$0xff] %v1685
    %1854 = vst [vmem:[#allocation5 + $0x2f8] sm:$0xff] %v1686
    %1855 = vst [vmem:[#allocation5 + $0x300] sm:$0xff] %v1687
    %1856 = vst.msk [vmem:[#allocation5 + $0x308] sm:$0xff] %vm202, %v1688
    %1857 = vst [vmem:[#allocation5 + $0x310] sm:$0xff] %v1689
    %1858 = vst [vmem:[#allocation5 + $0x318] sm:$0xff] %v1690
    %1859 = vst [vmem:[#allocation5 + $0x320] sm:$0xff] %v1691
    %1860 = vst [vmem:[#allocation5 + $0x328] sm:$0xff] %v1692
    %1861 = vst [vmem:[#allocation5 + $0x330] sm:$0xff] %v1693
    %1862 = vst [vmem:[#allocation5 + $0x338] sm:$0xff] %v1694
    %1863 = vst.msk [vmem:[#allocation5 + $0x340] sm:$0xff] %vm202, %v1695
    %1864 = vst [vmem:[#allocation5 + $0x348] sm:$0xff] %v1696
    %1865 = vst [vmem:[#allocation5 + $0x350] sm:$0xff] %v1697
    %1866 = vst [vmem:[#allocation5 + $0x358] sm:$0xff] %v1698
    %1867 = vst [vmem:[#allocation5 + $0x360] sm:$0xff] %v1699
    %1868 = vst [vmem:[#allocation5 + $0x368] sm:$0xff] %v1700
    %1869 = vst [vmem:[#allocation5 + $0x370] sm:$0xff] %v1701
    %1870 = vst.msk [vmem:[#allocation5 + $0x378] sm:$0xff] %vm202, %v1702
    %1871 = vst [vmem:[#allocation5 + $0x380] sm:$0xff] %v1703
    %1872 = vst [vmem:[#allocation5 + $0x388] sm:$0xff] %v1704
    %1873 = vst [vmem:[#allocation5 + $0x390] sm:$0xff] %v1705
    %1874 = vst [vmem:[#allocation5 + $0x398] sm:$0xff] %v1706
    %1875 = vst [vmem:[#allocation5 + $0x3a0] sm:$0xff] %v1707
    %1876 = vst [vmem:[#allocation5 + $0x3a8] sm:$0xff] %v1708
    %1877 = vst.msk [vmem:[#allocation5 + $0x3b0] sm:$0xff] %vm202, %v1709
    %1878 = vst [vmem:[#allocation5 + $0x3b8] sm:$0xff] %v1710
    %1879 = vst [vmem:[#allocation5 + $0x3c0] sm:$0xff] %v1711
    %1880 = vst [vmem:[#allocation5 + $0x3c8] sm:$0xff] %v1712
    %1881 = vst [vmem:[#allocation5 + $0x3d0] sm:$0xff] %v1713
    %1882 = vst [vmem:[#allocation5 + $0x3d8] sm:$0xff] %v1714
    %1883 = vst [vmem:[#allocation5 + $0x3e0] sm:$0xff] %v1715
    %1884 = vst.msk [vmem:[#allocation5 + $0x3e8] sm:$0xff] %vm202, %v1716
    %1885 = vst [vmem:[#allocation5 + $0x3f0] sm:$0xff] %v1717
    %1886 = vst [vmem:[#allocation5 + $0x3f8] sm:$0xff] %v1718
    %1887 = vst [vmem:[#allocation5 + $0x400] sm:$0xff] %v1719
    %1888 = vst [vmem:[#allocation5 + $0x408] sm:$0xff] %v1720
    %1889 = vst [vmem:[#allocation5 + $0x410] sm:$0xff] %v1721
    %1890 = vst [vmem:[#allocation5 + $0x418] sm:$0xff] %v1722
    %1891 = vst.msk [vmem:[#allocation5 + $0x420] sm:$0xff] %vm202, %v1723
    %1892 = vst [vmem:[#allocation5 + $0x428] sm:$0xff] %v1724
    %1893 = vst [vmem:[#allocation5 + $0x430] sm:$0xff] %v1725
    %1894 = vst [vmem:[#allocation5 + $0x438] sm:$0xff] %v1726
    %1895 = vst [vmem:[#allocation5 + $0x440] sm:$0xff] %v1727
    %1896 = vst [vmem:[#allocation5 + $0x448] sm:$0xff] %v1728
    %1897 = vst [vmem:[#allocation5 + $0x450] sm:$0xff] %v1729
    %1898 = vst.msk [vmem:[#allocation5 + $0x458] sm:$0xff] %vm202, %v1730
    %1899 = vst [vmem:[#allocation5 + $0x460] sm:$0xff] %v1731
    %1900 = vst [vmem:[#allocation5 + $0x468] sm:$0xff] %v1732
    %1901 = vst [vmem:[#allocation5 + $0x470] sm:$0xff] %v1733
    %1902 = vst [vmem:[#allocation5 + $0x478] sm:$0xff] %v1734
    %1903 = vst [vmem:[#allocation5 + $0x480] sm:$0xff] %v1735
    %1904 = vst [vmem:[#allocation5 + $0x488] sm:$0xff] %v1736
    %1905 = vst.msk [vmem:[#allocation5 + $0x490] sm:$0xff] %vm202, %v1737
    %1906 = vst [vmem:[#allocation5 + $0x498] sm:$0xff] %v1738
    %1907 = vst [vmem:[#allocation5 + $0x4a0] sm:$0xff] %v1739
    %1908 = vst [vmem:[#allocation5 + $0x4a8] sm:$0xff] %v1740
    %1909 = vst [vmem:[#allocation5 + $0x4b0] sm:$0xff] %v1741
    %1910 = vst [vmem:[#allocation5 + $0x4b8] sm:$0xff] %v1742
    %1911 = vst [vmem:[#allocation5 + $0x4c0] sm:$0xff] %v1743
    %1912 = vst.msk [vmem:[#allocation5 + $0x4c8] sm:$0xff] %vm202, %v1744
    %1913 = vst [vmem:[#allocation5 + $0x4d0] sm:$0xff] %v1745
    %1914 = vst [vmem:[#allocation5 + $0x4d8] sm:$0xff] %v1746
    %1915 = vst [vmem:[#allocation5 + $0x4e0] sm:$0xff] %v1747
    %1916 = vst [vmem:[#allocation5 + $0x4e8] sm:$0xff] %v1748
    %1917 = vst [vmem:[#allocation5 + $0x4f0] sm:$0xff] %v1749
    %1918 = vst [vmem:[#allocation5 + $0x4f8] sm:$0xff] %v1750
    %1919 = vst.msk [vmem:[#allocation5 + $0x500] sm:$0xff] %vm202, %v1751
    %1920 = vst [vmem:[#allocation5 + $0x508] sm:$0xff] %v1752
    %1921 = vst [vmem:[#allocation5 + $0x510] sm:$0xff] %v1753
    %1922 = vst [vmem:[#allocation5 + $0x518] sm:$0xff] %v1754
    %1923 = vst [vmem:[#allocation5 + $0x520] sm:$0xff] %v1755
    %1924 = vst [vmem:[#allocation5 + $0x528] sm:$0xff] %v1756
    %1925 = vst [vmem:[#allocation5 + $0x530] sm:$0xff] %v1757
    %1926 = vst.msk [vmem:[#allocation5 + $0x538] sm:$0xff] %vm202, %v1758
    // Predicated region
    $region18: #{tpu_custom_call.1} parent=1 // pred_check
      _
    $region19: #{tpu_custom_call.1} parent=1 // pred_check_branch
      %1928 = sbr.rel (0) target = $region21
    $region20: #{tpu_custom_call.1} parent=1 // pred_region
      %s1930 = ssub.s32 21504, 21504
      %1931 = vsyncadd [#allocation4], %s1930
      %s1932 = sshll.u32 [#allocation5], 4
      %s1933 = int_to_ptr.vmem [resolvable:$true] %s1932
      %1938 = dma.vmem_to_hbm [thread:$0]  %s1933, 21504, %s3, [#allocation4], 896, 896, 56
    $region21: #{tpu_custom_call.1} parent=1 // pred_fallthru
      _
    // Predicated region
    $region22: #{tpu_custom_call.1} parent=1 // pred_check
      _
    $region23: #{tpu_custom_call.1} parent=1 // pred_check_branch
      %1940 = sbr.rel (0) target = $region25
    $region24: #{tpu_custom_call.1} parent=1 // pred_region
      %1941 = dma.done [#allocation4], 21504
    $region25: #{tpu_custom_call.1} parent=1 // pred_fallthru
      _
    %1942 = vsyncpa [#allocation3], 1
    %1943 = vsyncpa [#allocation4], 1

</llo_original>
